<compile_context>
chip_gen: v7x
topology: tpu7x:2x2x1
jax: 0.10.0
libtpu: 0.0.40
codegen_flags: <defaults>
</compile_context>

<pallas_src>
import functools

import jax
import jax.numpy as jnp
from jax.experimental import pallas as pl
from jax.experimental.pallas import tpu as pltpu


def _round_up(x, m):
    return ((x + m - 1) // m) * m


def _i_chunk(I, target=512):
    """Largest I-chunk <= target that is a multiple of 128 and divides I."""
    if I <= target:
        return I
    t = (target // 128) * 128
    while t >= 128:
        if I % t == 0:
            return t
        t -= 128
    return I


def _vmem_limit(nbytes, headroom=8 << 20, cap=64 << 20):
    """Scoped-VMEM request: computed footprint + headroom, clamped to [16, 64] MiB."""
    return int(min(max(nbytes + headroom, 16 << 20), cap))


# ----------------------------- Pallas kernels ------------------------------ #

def _router_kernel(x_ref, rw_ref, logits_ref):
    """float32 router matmul on one token tile (matches autocast(enabled=False))."""
    # Cast in-kernel: no f32 activation copy materialized in HBM.
    logits_ref[...] = jnp.dot(x_ref[...].astype(jnp.float32), rw_ref[...],
                              preferred_element_type=jnp.float32)


def _shared_mlp_kernel(x_ref, gw_ref, uw_ref, dw_ref, o_ref):
    """Shared-experts SwiGLU MLP on one token tile."""
    x = x_ref[...]
    g = jnp.dot(x, gw_ref[...], preferred_element_type=jnp.float32)
    u = jnp.dot(x, uw_ref[...], preferred_element_type=jnp.float32)
    a = (jax.nn.silu(g) * u).astype(x.dtype)
    o_ref[...] = jnp.dot(a, dw_ref[...],
                         preferred_element_type=jnp.float32).astype(o_ref.dtype)


def _grouped_expert_kernel(be_ref, bn_ref,                      # scalar prefetch
                           x_ref, w_ref, gw_ref, uw_ref, dw_ref,
                           o_ref, acc_ref):
    """One (token-tile, I-chunk) step of the expert-sorted grouped SwiGLU GEMM.

    The expert is selected by the prefetch-driven index_maps of gw/uw/dw.
    The down-projection is accumulated over I-chunks into an f32 scratch.
    """
    del be_ref  # consumed by the weight index_maps only
    b = pl.program_id(0)
    ic = pl.program_id(1)
    n_ic = pl.num_programs(1)
    nvalid = bn_ref[b]

    @pl.when(nvalid > 0)
    def _():
        @pl.when(ic == 0)
        def _():
            acc_ref[...] = jnp.zeros_like(acc_ref)

        x = x_ref[...]                                                # [tm, H]
        g = jnp.dot(x, gw_ref[0], preferred_element_type=jnp.float32)  # [tm, tI]
        u = jnp.dot(x, uw_ref[0], preferred_element_type=jnp.float32)
        # Routing weight (f32) applied to the [tm, tI] intermediate; padded
        # rows carry weight 0 -> contribute exactly 0.
        a = (jax.nn.silu(g) * u) * w_ref[...]
        acc_ref[...] += jnp.dot(a.astype(x.dtype), dw_ref[0],
                                preferred_element_type=jnp.float32)

        @pl.when(ic == n_ic - 1)
        def _():
            o_ref[...] = acc_ref[...].astype(o_ref.dtype)

    # Fully-dead trailing padding block: skip all matmuls, emit zeros so the
    # wrapper's scatter-add of this tile is a no-op.
    @pl.when(jnp.logical_and(nvalid == 0, ic == n_ic - 1))
    def _():
        o_ref[...] = jnp.zeros_like(o_ref)


# ------------------------------ Python wrapper ------------------------------ #

def ernie45_moe_block(hidden_states, params, *, top_k, norm_min,
                      token_tile=256, group_tile=512, i_chunk=512):
    B, S, H = hidden_states.shape
    T = B * S
    dtype = hidden_states.dtype
    itemsize = jnp.dtype(dtype).itemsize
    x = hidden_states.reshape(T, H)

    E, _, I = params["w_gate"].shape
    I_s = params["shared_gate_w"].shape[1]
    K = top_k

    # ---- 0) Token padding / tiling for the dense per-token kernels. --------
    tm_s = min(token_tile, _round_up(T, 8))       # lane/sublane-aligned tile
    T_pad = _round_up(T, tm_s)
    x_pad = x if T_pad == T else jnp.pad(x, ((0, T_pad - T), (0, 0)))

    # ---- 1a) Router logits: tiny kernel issued first so the routing glue and
    #          the [P,H] gather overlap with the shared-experts MLP. ---------
    # TODO(synk): on v5e pad router_w to 128 lanes for lane-dense stores.
    router_vmem = _vmem_limit(H * E * 4 + 2 * tm_s * (H * itemsize + E * 4))
    router_logits_pad = pl.pallas_call(
        _router_kernel,
        out_shape=jax.ShapeDtypeStruct((T_pad, E), jnp.float32),
        grid=(T_pad // tm_s,),
        in_specs=[
            pl.BlockSpec((tm_s, H), lambda i: (i, 0)),
            pl.BlockSpec((H, E), lambda i: (0, 0),
                         pipeline_mode=pl.Buffered(1)),          # grid-invariant
        ],
        out_specs=pl.BlockSpec((tm_s, E), lambda i: (i, 0)),
        compiler_params=pltpu.CompilerParams(
            dimension_semantics=("parallel",), vmem_limit_bytes=router_vmem),
    )(x_pad, params["router_w"])
    router_logits = router_logits_pad[:T]

    # ---- 1b) Shared-experts SwiGLU MLP (independent of routing). -----------
    shared_vmem = _vmem_limit((2 * H * I_s + I_s * H) * itemsize     # 1-buffered weights
                              + 4 * tm_s * H * itemsize             # x + out, 2-buffered
                              + 2 * tm_s * I_s * 4)                 # f32 intermediates
    shared_out_pad = pl.pallas_call(
        _shared_mlp_kernel,
        out_shape=jax.ShapeDtypeStruct((T_pad, H), dtype),
        grid=(T_pad // tm_s,),
        in_specs=[
            pl.BlockSpec((tm_s, H), lambda i: (i, 0)),
            pl.BlockSpec((H, I_s), lambda i: (0, 0), pipeline_mode=pl.Buffered(1)),
            pl.BlockSpec((H, I_s), lambda i: (0, 0), pipeline_mode=pl.Buffered(1)),
            pl.BlockSpec((I_s, H), lambda i: (0, 0), pipeline_mode=pl.Buffered(1)),
        ],
        out_specs=pl.BlockSpec((tm_s, H), lambda i: (i, 0)),
        compiler_params=pltpu.CompilerParams(
            dimension_semantics=("parallel",), vmem_limit_bytes=shared_vmem),
    )(x_pad, params["shared_gate_w"], params["shared_up_w"],
      params["shared_down_w"])
    shared_out = shared_out_pad if T_pad == T else shared_out_pad[:T]

    # ---- 2) Routing glue (softmax / bias / top-k / normalize), plain JAX. ---
    routing = jax.nn.softmax(router_logits, axis=-1)
    routing = routing + params["e_score_correction_bias"].squeeze()
    topk_w, topk_idx = jax.lax.top_k(routing, K)                       # [T, K]
    denom = jnp.maximum(jnp.sum(topk_w, axis=-1, keepdims=True), norm_min)
    topk_w = (topk_w / denom).astype(dtype)   # value-quantized like the reference

    # ---- 3) Expert-sorted, block-aligned dispatch (static shapes). ---------
    avg_rows = -(-(T * K) // E)
    tm_g = min(group_tile, max(128, _round_up(avg_rows, 128)))   # MXU-sized tiles
    tI = _i_chunk(I, i_chunk)
    n_ic = I // tI
    num_blocks = -(-(T * K) // tm_g) + E          # static upper bound
    P = num_blocks * tm_g

    flat_expert = topk_idx.reshape(-1).astype(jnp.int32)               # [T*K]
    flat_token = jnp.repeat(jnp.arange(T, dtype=jnp.int32), K)         # [T*K]
    flat_w = topk_w.reshape(-1).astype(jnp.float32)    # routing weights stay f32

    counts = jnp.bincount(flat_expert, length=E).astype(jnp.int32)     # [E]
    padded_counts = ((counts + tm_g - 1) // tm_g) * tm_g
    group_end_p = jnp.cumsum(padded_counts)
    group_start_p = group_end_p - padded_counts
    group_start_u = jnp.cumsum(counts) - counts

    order = jnp.argsort(flat_expert)
    s_expert = flat_expert[order]
    s_token = flat_token[order]
    s_w = flat_w[order]
    pos_in_group = jnp.arange(T * K, dtype=jnp.int32) - group_start_u[s_expert]
    dest = group_start_p[s_expert] + pos_in_group                      # [T*K] in [0, P)

    token_ids = jnp.zeros((P,), jnp.int32).at[dest].set(s_token)
    row_w = jnp.zeros((P,), jnp.float32).at[dest].set(s_w)             # 0 on padding

    block_start = jnp.arange(num_blocks, dtype=jnp.int32) * tm_g
    used_expert = jnp.minimum(
        jnp.searchsorted(group_end_p, block_start, side="right"), E - 1
    ).astype(jnp.int32)
    total_padded = group_end_p[-1]
    num_used = total_padded // tm_g
    last_used_expert = used_expert[jnp.maximum(num_used - 1, 0)]
    is_dead = block_start >= total_padded
    # Dead trailing blocks reuse the previous block's expert id so the weight
    # index_map does not trigger a redundant weight refetch.
    block_expert = jnp.where(is_dead, last_used_expert, used_expert).astype(jnp.int32)
    block_nrows = jnp.clip(group_start_p[block_expert] + counts[block_expert]
                           - block_start, 0, tm_g).astype(jnp.int32)

    # Data-dependent per-row gather left to XLA (no rectangular BlockSpec form).
    x_sorted = jnp.take(x, token_ids, axis=0)                          # [P, H]

    # ---- 4) Grouped expert GEMM (expert + liveness via scalar prefetch). ---
    grouped_vmem = _vmem_limit(
        2 * (2 * H * tI + tI * H) * itemsize        # double-buffered weight chunks
        + 4 * tm_g * H * itemsize                   # x + out tiles (2-buffered)
        + tm_g * H * 4                              # f32 accumulator scratch
        + 2 * tm_g * tI * 4 + 4 * tm_g * 4)         # f32 intermediates + row weights
    y_sorted = pl.pallas_call(
        _grouped_expert_kernel,
        out_shape=jax.ShapeDtypeStruct((P, H), dtype),
        grid_spec=pltpu.PrefetchScalarGridSpec(
            num_scalar_prefetch=2,
            grid=(num_blocks, n_ic),
            in_specs=[
                pl.BlockSpec((tm_g, H), lambda b, c, be, bn: (b, 0)),      # tokens
                pl.BlockSpec((tm_g, 1), lambda b, c, be, bn: (b, 0)),      # row weights
                pl.BlockSpec((1, H, tI), lambda b, c, be, bn: (be[b], 0, c)),  # gate[e]
                pl.BlockSpec((1, H, tI), lambda b, c, be, bn: (be[b], 0, c)),  # up[e]
                pl.BlockSpec((1, tI, H), lambda b, c, be, bn: (be[b], c, 0)),  # down[e]
            ],
            out_specs=pl.BlockSpec((tm_g, H), lambda b, c, be, bn: (b, 0)),
            scratch_shapes=[pltpu.VMEM((tm_g, H), jnp.float32)]),
        compiler_params=pltpu.CompilerParams(
            dimension_semantics=("parallel", "arbitrary"),
            vmem_limit_bytes=grouped_vmem),
    )(block_expert, block_nrows, x_sorted, row_w[:, None],
      params["w_gate"], params["w_up"], params["w_down"])

    # ---- 5) Fused combine: scatter-add (== torch index_add_) directly into
    #         the shared-experts output; padding rows are exactly 0. ---------
    final = shared_out.at[token_ids].add(y_sorted)

    return final.reshape(B, S, H), router_logits


# --------------------------- deterministic params --------------------------- #

def init_params(key, H, E, I, n_shared, dtype=jnp.float32):
    ks = jax.random.split(key, 7)
    scale = 0.02
    I_s = I * n_shared
    return {
        # nn.Linear(H, E, bias=False) weight [E, H] stored transposed as [H, E].
        "router_w": (jax.random.normal(ks[0], (H, E), jnp.float32) * scale),
        # Ernie4_5_MoEStatics: zeros, non-trainable.
        "e_score_correction_bias": jnp.zeros((1, E), jnp.float32),
        # Per-expert SwiGLU MLP weights, stacked over experts (math layout).
        "w_gate": jax.random.normal(ks[1], (E, H, I), dtype) * scale,
        "w_up": jax.random.normal(ks[2], (E, H, I), dtype) * scale,
        "w_down": jax.random.normal(ks[3], (E, I, H), dtype) * scale,
        # Shared experts MLP (intermediate = I * num_shared_experts).
        "shared_gate_w": jax.random.normal(ks[4], (H, I_s), dtype) * scale,
        "shared_up_w": jax.random.normal(ks[5], (H, I_s), dtype) * scale,
        "shared_down_w": jax.random.normal(ks[6], (I_s, H), dtype) * scale,
    }


# ----------------------------------- main ----------------------------------- #

if __name__ == "__main__":
    B, S, H = 2, 8, 32          # batch, seq, hidden_size
    E, K, I = 8, 2, 16          # moe_num_experts, moe_k, moe_intermediate_size
    N_SHARED = 1                # moe_num_shared_experts
    NORM_MIN = 1e-12            # moe_norm_min

    key = jax.random.PRNGKey(0)
    k_x, k_p = jax.random.split(key)
    hidden_states = jax.random.normal(k_x, (B, S, H), jnp.float32)
    params = init_params(k_p, H, E, I, N_SHARED, dtype=jnp.float32)

    fwd = jax.jit(functools.partial(ernie45_moe_block, top_k=K, norm_min=NORM_MIN))
    final_hidden_states, router_logits = fwd(hidden_states, params)
    jax.block_until_ready((final_hidden_states, router_logits))

    assert final_hidden_states.shape == (B, S, H)
    assert router_logits.shape == (B * S, E)
    print("KERNEL_OK")
</pallas_src>

<mosaic_0001>
module attributes {stable_mosaic.version = 11 : i64} {
  func.func private @main(%arg0: i32) attributes {dimension_semantics = [#tpu.dimension_semantics<core_parallel>], iteration_bounds = array<i64: 2>, tpu.core_type = #tpu.core_type<sc_scalar_subcore>, window_params = []} {
    return
  }
}

module attributes {stable_mosaic.version = 11 : i64} {
  func.func private @main(%arg0: i32) attributes {dimension_semantics = [#tpu.dimension_semantics<core_parallel>], iteration_bounds = array<i64: 2>, tpu.core_type = #tpu.core_type<sc_scalar_subcore>, window_params = []} {
    return
  }
}

module attributes {stable_mosaic.version = 11 : i64} {
  func.func @_router_kernel(%arg0: i32, %arg1: memref<16x32xf32, #tpu.memory_space<vmem>>, %arg2: memref<32x8xf32, #tpu.memory_space<vmem>>, %arg3: memref<16x8xf32, #tpu.memory_space<vmem>>) attributes {dimension_semantics = [#tpu.dimension_semantics<parallel>], iteration_bounds = array<i64: 1>, scalar_prefetch = 0 : i64, scratch_operands = 0 : i64, tpu.core_type = #tpu.core_type<tc>, window_params = [{transform_indices = @transform_0, window_bounds = array<i64: 16, 32>}, {pipeline_mode = #tpu.pipeline_mode<synchronous>, transform_indices = @transform_1, window_bounds = array<i64: 32, 8>}, {transform_indices = @transform_2, window_bounds = array<i64: 16, 8>}]} {
    %c0 = arith.constant 0 : index
    %c0_0 = arith.constant 0 : index
    %0 = vector.load %arg1[%c0, %c0_0] : memref<16x32xf32, #tpu.memory_space<vmem>>, vector<16x32xf32>
    %c0_1 = arith.constant 0 : index
    %c0_2 = arith.constant 0 : index
    %1 = vector.load %arg2[%c0_1, %c0_2] : memref<32x8xf32, #tpu.memory_space<vmem>>, vector<32x8xf32>
    %cst = arith.constant dense<0.000000e+00> : vector<16x8xf32>
    %2 = tpu.matmul %0, %1, %cst {dimension_numbers = #tpu.dot_dimension_numbers<[1], [0], [0], [1], [0, 0, 1, 1], [], []>} : vector<16x32xf32>, vector<32x8xf32>, vector<16x8xf32> -> vector<16x8xf32>
    %c0_3 = arith.constant 0 : index
    %c0_4 = arith.constant 0 : index
    %3 = vector.load %arg3[%c0_3, %c0_4] : memref<16x8xf32, #tpu.memory_space<vmem>>, vector<16x8xf32>
    tpu.vector_store %arg3[%c0_3, %c0_4], %2 {strides = array<i32>} : memref<16x8xf32, #tpu.memory_space<vmem>>, vector<16x8xf32>,
    return
  }
  func.func @transform_0(%arg0: i32) -> (i32, i32) {
    %c0_i32 = arith.constant 0 : i32
    %c0_i32_0 = arith.constant 0 : i32
    return %arg0, %c0_i32 : i32, i32
  }
  func.func @transform_1(%arg0: i32) -> (i32, i32) {
    %c0_i32 = arith.constant 0 : i32
    %c0_i32_0 = arith.constant 0 : i32
    %c0_i32_1 = arith.constant 0 : i32
    return %c0_i32, %c0_i32_0 : i32, i32
  }
  func.func @transform_2(%arg0: i32) -> (i32, i32) {
    %c0_i32 = arith.constant 0 : i32
    %c0_i32_0 = arith.constant 0 : i32
    return %arg0, %c0_i32 : i32, i32
  }
}

module attributes {stable_mosaic.version = 11 : i64} {
  func.func @_shared_mlp_kernel(%arg0: i32, %arg1: memref<16x32xf32, #tpu.memory_space<vmem>>, %arg2: memref<32x16xf32, #tpu.memory_space<vmem>>, %arg3: memref<32x16xf32, #tpu.memory_space<vmem>>, %arg4: memref<16x32xf32, #tpu.memory_space<vmem>>, %arg5: memref<16x32xf32, #tpu.memory_space<vmem>>) attributes {dimension_semantics = [#tpu.dimension_semantics<parallel>], iteration_bounds = array<i64: 1>, scalar_prefetch = 0 : i64, scratch_operands = 0 : i64, tpu.core_type = #tpu.core_type<tc>, window_params = [{transform_indices = @transform_0, window_bounds = array<i64: 16, 32>}, {pipeline_mode = #tpu.pipeline_mode<synchronous>, transform_indices = @transform_1, window_bounds = array<i64: 32, 16>}, {pipeline_mode = #tpu.pipeline_mode<synchronous>, transform_indices = @transform_2, window_bounds = array<i64: 32, 16>}, {pipeline_mode = #tpu.pipeline_mode<synchronous>, transform_indices = @transform_3, window_bounds = array<i64: 16, 32>}, {transform_indices = @transform_4, window_bounds = array<i64: 16, 32>}]} {
    %c0 = arith.constant 0 : index
    %c0_0 = arith.constant 0 : index
    %0 = vector.load %arg1[%c0, %c0_0] : memref<16x32xf32, #tpu.memory_space<vmem>>, vector<16x32xf32>
    %c0_1 = arith.constant 0 : index
    %c0_2 = arith.constant 0 : index
    %1 = vector.load %arg2[%c0_1, %c0_2] : memref<32x16xf32, #tpu.memory_space<vmem>>, vector<32x16xf32>
    %cst = arith.constant dense<0.000000e+00> : vector<16x16xf32>
    %2 = tpu.matmul %0, %1, %cst {dimension_numbers = #tpu.dot_dimension_numbers<[1], [0], [0], [1], [0, 0, 1, 1], [], []>} : vector<16x32xf32>, vector<32x16xf32>, vector<16x16xf32> -> vector<16x16xf32>
    %c0_3 = arith.constant 0 : index
    %c0_4 = arith.constant 0 : index
    %3 = vector.load %arg3[%c0_3, %c0_4] : memref<32x16xf32, #tpu.memory_space<vmem>>, vector<32x16xf32>
    %cst_5 = arith.constant dense<0.000000e+00> : vector<16x16xf32>
    %4 = tpu.matmul %0, %3, %cst_5 {dimension_numbers = #tpu.dot_dimension_numbers<[1], [0], [0], [1], [0, 0, 1, 1], [], []>} : vector<16x32xf32>, vector<32x16xf32>, vector<16x16xf32> -> vector<16x16xf32>
    %5 = arith.negf %2 : vector<16x16xf32>
    %6 = math.exp %5 : vector<16x16xf32>
    %cst_6 = arith.constant 1.000000e+00 : f32
    %7 = vector.broadcast %cst_6 : f32 to vector<16x16xf32>
    %8 = arith.addf %7, %6 : vector<16x16xf32>
    %9 = arith.divf %7, %8 : vector<16x16xf32>
    %10 = arith.mulf %2, %9 : vector<16x16xf32>
    %11 = arith.mulf %10, %4 : vector<16x16xf32>
    %c0_7 = arith.constant 0 : index
    %c0_8 = arith.constant 0 : index
    %12 = vector.load %arg4[%c0_7, %c0_8] : memref<16x32xf32, #tpu.memory_space<vmem>>, vector<16x32xf32>
    %cst_9 = arith.constant dense<0.000000e+00> : vector<16x32xf32>
    %13 = tpu.matmul %11, %12, %cst_9 {dimension_numbers = #tpu.dot_dimension_numbers<[1], [0], [0], [1], [0, 0, 1, 1], [], []>} : vector<16x16xf32>, vector<16x32xf32>, vector<16x32xf32> -> vector<16x32xf32>
    %c0_10 = arith.constant 0 : index
    %c0_11 = arith.constant 0 : index
    %14 = vector.load %arg5[%c0_10, %c0_11] : memref<16x32xf32, #tpu.memory_space<vmem>>, vector<16x32xf32>
    tpu.vector_store %arg5[%c0_10, %c0_11], %13 {strides = array<i32>} : memref<16x32xf32, #tpu.memory_space<vmem>>, vector<16x32xf32>,
    return
  }
  func.func @transform_0(%arg0: i32) -> (i32, i32) {
    %c0_i32 = arith.constant 0 : i32
    %c0_i32_0 = arith.constant 0 : i32
    return %arg0, %c0_i32 : i32, i32
  }
  func.func @transform_1(%arg0: i32) -> (i32, i32) {
    %c0_i32 = arith.constant 0 : i32
    %c0_i32_0 = arith.constant 0 : i32
    %c0_i32_1 = arith.constant 0 : i32
    return %c0_i32, %c0_i32_0 : i32, i32
  }
  func.func @transform_2(%arg0: i32) -> (i32, i32) {
    %c0_i32 = arith.constant 0 : i32
    %c0_i32_0 = arith.constant 0 : i32
    %c0_i32_1 = arith.constant 0 : i32
    return %c0_i32, %c0_i32_0 : i32, i32
  }
  func.func @transform_3(%arg0: i32) -> (i32, i32) {
    %c0_i32 = arith.constant 0 : i32
    %c0_i32_0 = arith.constant 0 : i32
    %c0_i32_1 = arith.constant 0 : i32
    return %c0_i32, %c0_i32_0 : i32, i32
  }
  func.func @transform_4(%arg0: i32) -> (i32, i32) {
    %c0_i32 = arith.constant 0 : i32
    %c0_i32_0 = arith.constant 0 : i32
    return %arg0, %c0_i32 : i32, i32
  }
}

module attributes {stable_mosaic.version = 11 : i64} {
  func.func @_grouped_expert_kernel(%arg0: i32, %arg1: i32, %arg2: memref<9xi32, #tpu.memory_space<smem>>, %arg3: memref<9xi32, #tpu.memory_space<smem>>, %arg4: memref<128x32xf32, #tpu.memory_space<vmem>>, %arg5: memref<128x1xf32, #tpu.memory_space<vmem>>, %arg6: memref<1x32x16xf32, #tpu.memory_space<vmem>>, %arg7: memref<1x32x16xf32, #tpu.memory_space<vmem>>, %arg8: memref<1x16x32xf32, #tpu.memory_space<vmem>>, %arg9: memref<128x32xf32, #tpu.memory_space<vmem>>, %arg10: memref<128x32xf32, #tpu.memory_space<vmem>>) attributes {dimension_semantics = [#tpu.dimension_semantics<parallel>, #tpu.dimension_semantics<arbitrary>], iteration_bounds = array<i64: 9, 1>, scalar_prefetch = 2 : i64, scratch_operands = 1 : i64, tpu.core_type = #tpu.core_type<tc>, window_params = [{transform_indices = @transform_0, window_bounds = array<i64: 128, 32>}, {transform_indices = @transform_1, window_bounds = array<i64: 128, 1>}, {transform_indices = @transform_2, window_bounds = array<i64: 1, 32, 16>}, {transform_indices = @transform_3, window_bounds = array<i64: 1, 32, 16>}, {transform_indices = @transform_4, window_bounds = array<i64: 1, 16, 32>}, {transform_indices = @transform_5, window_bounds = array<i64: 128, 32>}]} {
    %0 = arith.index_cast %arg0 : i32 to index
    %1 = memref.load %arg3[%0] : memref<9xi32, #tpu.memory_space<smem>>
    %c0_i32 = arith.constant 0 : i32
    %2 = arith.cmpi sgt, %1, %c0_i32 : i32
    %3 = arith.extui %2 : i1 to i32
    %c0_i32_0 = arith.constant 0 : i32
    %4 = arith.cmpi ne, %3, %c0_i32_0 : i32
    scf.if %4 {
      %c0_i32_4 = arith.constant 0 : i32
      %10 = arith.cmpi eq, %arg1, %c0_i32_4 : i32
      %11 = arith.extui %10 : i1 to i32
      %c0_i32_5 = arith.constant 0 : i32
      %12 = arith.cmpi ne, %11, %c0_i32_5 : i32
      scf.if %12 {
        %cst_27 = arith.constant 0.000000e+00 : f32
        %39 = vector.broadcast %cst_27 : f32 to vector<128x32xf32>
        %c0_28 = arith.constant 0 : index
        %c0_29 = arith.constant 0 : index
        %40 = vector.load %arg10[%c0_28, %c0_29] : memref<128x32xf32, #tpu.memory_space<vmem>>, vector<128x32xf32>
        tpu.vector_store %arg10[%c0_28, %c0_29], %39 {strides = array<i32>} : memref<128x32xf32, #tpu.memory_space<vmem>>, vector<128x32xf32>,
      } else {
      }
      %c0 = arith.constant 0 : index
      %c0_6 = arith.constant 0 : index
      %13 = vector.load %arg4[%c0, %c0_6] : memref<128x32xf32, #tpu.memory_space<vmem>>, vector<128x32xf32>
      %c0_7 = arith.constant 0 : index
      %c0_8 = arith.constant 0 : index
      %c0_9 = arith.constant 0 : index
      %14 = vector.load %arg6[%c0_7, %c0_8, %c0_9] : memref<1x32x16xf32, #tpu.memory_space<vmem>>, vector<1x32x16xf32>
      %15 = vector.shape_cast %14 : vector<1x32x16xf32> to vector<32x16xf32>
      %cst = arith.constant dense<0.000000e+00> : vector<128x16xf32>
      %16 = tpu.matmul %13, %15, %cst {dimension_numbers = #tpu.dot_dimension_numbers<[1], [0], [0], [1], [0, 0, 1, 1], [], []>} : vector<128x32xf32>, vector<32x16xf32>, vector<128x16xf32> -> vector<128x16xf32>
      %c0_10 = arith.constant 0 : index
      %c0_11 = arith.constant 0 : index
      %c0_12 = arith.constant 0 : index
      %17 = vector.load %arg7[%c0_10, %c0_11, %c0_12] : memref<1x32x16xf32, #tpu.memory_space<vmem>>, vector<1x32x16xf32>
      %18 = vector.shape_cast %17 : vector<1x32x16xf32> to vector<32x16xf32>
      %cst_13 = arith.constant dense<0.000000e+00> : vector<128x16xf32>
      %19 = tpu.matmul %13, %18, %cst_13 {dimension_numbers = #tpu.dot_dimension_numbers<[1], [0], [0], [1], [0, 0, 1, 1], [], []>} : vector<128x32xf32>, vector<32x16xf32>, vector<128x16xf32> -> vector<128x16xf32>
      %20 = arith.negf %16 : vector<128x16xf32>
      %21 = math.exp %20 : vector<128x16xf32>
      %cst_14 = arith.constant 1.000000e+00 : f32
      %22 = vector.broadcast %cst_14 : f32 to vector<128x16xf32>
      %23 = arith.addf %22, %21 : vector<128x16xf32>
      %24 = arith.divf %22, %23 : vector<128x16xf32>
      %25 = arith.mulf %16, %24 : vector<128x16xf32>
      %26 = arith.mulf %25, %19 : vector<128x16xf32>
      %c0_15 = arith.constant 0 : index
      %c0_16 = arith.constant 0 : index
      %27 = vector.load %arg5[%c0_15, %c0_16] : memref<128x1xf32, #tpu.memory_space<vmem>>, vector<128x1xf32>
      %28 = vector.broadcast %27 : vector<128x1xf32> to vector<128x16xf32>
      %29 = arith.mulf %26, %28 : vector<128x16xf32>
      %c0_17 = arith.constant 0 : index
      %c0_18 = arith.constant 0 : index
      %30 = vector.load %arg10[%c0_17, %c0_18] : memref<128x32xf32, #tpu.memory_space<vmem>>, vector<128x32xf32>
      %c0_19 = arith.constant 0 : index
      %c0_20 = arith.constant 0 : index
      %c0_21 = arith.constant 0 : index
      %31 = vector.load %arg8[%c0_19, %c0_20, %c0_21] : memref<1x16x32xf32, #tpu.memory_space<vmem>>, vector<1x16x32xf32>
      %32 = vector.shape_cast %31 : vector<1x16x32xf32> to vector<16x32xf32>
      %cst_22 = arith.constant dense<0.000000e+00> : vector<128x32xf32>
      %33 = tpu.matmul %29, %32, %cst_22 {dimension_numbers = #tpu.dot_dimension_numbers<[1], [0], [0], [1], [0, 0, 1, 1], [], []>} : vector<128x16xf32>, vector<16x32xf32>, vector<128x32xf32> -> vector<128x32xf32>
      %34 = arith.addf %30, %33 : vector<128x32xf32>
      %c0_23 = arith.constant 0 : index
      %c0_24 = arith.constant 0 : index
      %35 = vector.load %arg10[%c0_23, %c0_24] : memref<128x32xf32, #tpu.memory_space<vmem>>, vector<128x32xf32>
      tpu.vector_store %arg10[%c0_23, %c0_24], %34 {strides = array<i32>} : memref<128x32xf32, #tpu.memory_space<vmem>>, vector<128x32xf32>,
      %c0_i32_25 = arith.constant 0 : i32
      %36 = arith.cmpi eq, %arg1, %c0_i32_25 : i32
      %37 = arith.extui %36 : i1 to i32
      %c0_i32_26 = arith.constant 0 : i32
      %38 = arith.cmpi ne, %37, %c0_i32_26 : i32
      scf.if %38 {
        %c0_27 = arith.constant 0 : index
        %c0_28 = arith.constant 0 : index
        %39 = vector.load %arg10[%c0_27, %c0_28] : memref<128x32xf32, #tpu.memory_space<vmem>>, vector<128x32xf32>
        %c0_29 = arith.constant 0 : index
        %c0_30 = arith.constant 0 : index
        %40 = vector.load %arg9[%c0_29, %c0_30] : memref<128x32xf32, #tpu.memory_space<vmem>>, vector<128x32xf32>
        tpu.vector_store %arg9[%c0_29, %c0_30], %39 {strides = array<i32>} : memref<128x32xf32, #tpu.memory_space<vmem>>, vector<128x32xf32>,
      } else {
      }
    } else {
    }
    %c0_i32_1 = arith.constant 0 : i32
    %5 = arith.cmpi eq, %1, %c0_i32_1 : i32
    %c0_i32_2 = arith.constant 0 : i32
    %6 = arith.cmpi eq, %arg1, %c0_i32_2 : i32
    %7 = arith.andi %5, %6 : i1
    %8 = arith.extui %7 : i1 to i32
    %c0_i32_3 = arith.constant 0 : i32
    %9 = arith.cmpi ne, %8, %c0_i32_3 : i32
    scf.if %9 {
      %cst = arith.constant 0.000000e+00 : f32
      %10 = vector.broadcast %cst : f32 to vector<128x32xf32>
      %c0 = arith.constant 0 : index
      %c0_4 = arith.constant 0 : index
      %11 = vector.load %arg9[%c0, %c0_4] : memref<128x32xf32, #tpu.memory_space<vmem>>, vector<128x32xf32>
      tpu.vector_store %arg9[%c0, %c0_4], %10 {strides = array<i32>} : memref<128x32xf32, #tpu.memory_space<vmem>>, vector<128x32xf32>,
    } else {
    }
    return
  }
  func.func @transform_0(%arg0: i32, %arg1: i32, %arg2: memref<9xi32, #tpu.memory_space<smem>>, %arg3: memref<9xi32, #tpu.memory_space<smem>>) -> (i32, i32) {
    %c0_i32 = arith.constant 0 : i32
    %c0_i32_0 = arith.constant 0 : i32
    return %arg0, %c0_i32 : i32, i32
  }
  func.func @transform_1(%arg0: i32, %arg1: i32, %arg2: memref<9xi32, #tpu.memory_space<smem>>, %arg3: memref<9xi32, #tpu.memory_space<smem>>) -> (i32, i32) {
    %c0_i32 = arith.constant 0 : i32
    %c0_i32_0 = arith.constant 0 : i32
    return %arg0, %c0_i32 : i32, i32
  }
  func.func @transform_2(%arg0: i32, %arg1: i32, %arg2: memref<9xi32, #tpu.memory_space<smem>>, %arg3: memref<9xi32, #tpu.memory_space<smem>>) -> (i32, i32, i32) {
    %0 = arith.index_cast %arg0 : i32 to index
    %1 = memref.load %arg2[%0] : memref<9xi32, #tpu.memory_space<smem>>
    %c0_i32 = arith.constant 0 : i32
    %c0_i32_0 = arith.constant 0 : i32
    return %1, %c0_i32, %arg1 : i32, i32, i32
  }
  func.func @transform_3(%arg0: i32, %arg1: i32, %arg2: memref<9xi32, #tpu.memory_space<smem>>, %arg3: memref<9xi32, #tpu.memory_space<smem>>) -> (i32, i32, i32) {
    %0 = arith.index_cast %arg0 : i32 to index
    %1 = memref.load %arg2[%0] : memref<9xi32, #tpu.memory_space<smem>>
    %c0_i32 = arith.constant 0 : i32
    %c0_i32_0 = arith.constant 0 : i32
    return %1, %c0_i32, %arg1 : i32, i32, i32
  }
  func.func @transform_4(%arg0: i32, %arg1: i32, %arg2: memref<9xi32, #tpu.memory_space<smem>>, %arg3: memref<9xi32, #tpu.memory_space<smem>>) -> (i32, i32, i32) {
    %0 = arith.index_cast %arg0 : i32 to index
    %1 = memref.load %arg2[%0] : memref<9xi32, #tpu.memory_space<smem>>
    %c0_i32 = arith.constant 0 : i32
    %c0_i32_0 = arith.constant 0 : i32
    return %1, %arg1, %c0_i32 : i32, i32, i32
  }
  func.func @transform_5(%arg0: i32, %arg1: i32, %arg2: memref<9xi32, #tpu.memory_space<smem>>, %arg3: memref<9xi32, #tpu.memory_space<smem>>) -> (i32, i32) {
    %c0_i32 = arith.constant 0 : i32
    %c0_i32_0 = arith.constant 0 : i32
    return %arg0, %c0_i32 : i32, i32
  }
}

</mosaic_0001>

<llo_original>
// kernel: custom-call
$region0: #{custom-call}
  %s0 = inlined_call_operand.vmem [shape: u32[9], index: 0, kind: output, shape index: {}]

// kernel: ernie45_moe_block.3
$region0: #{ernie45_moe_block.3}
  #allocation0 [shape = 'u32[]', space=smem, size = 0x4, offset = 0x4, fixed_abs, tag = 'smem constant byte address 0x4 - core index']
  #allocation1 [shape = 'u32[144,128]{1,0:T(1,128)}', space=vmem, size = 0x12000, scoped, tag = 'internal scratch']
  %s0 = inlined_call_operand.vmem [shape: f32[16,32], index: 0, kind: input, shape index: {}]
  %s1 = inlined_call_operand.vmem [shape: f32[32,8], index: 1, kind: input, shape index: {}]
  %s2 = inlined_call_operand.vmem [shape: f32[16,8], index: 2, kind: output, shape index: {}]
  %s3 = sld [smem:[#allocation0]]
  $region18: #{ernie45_moe_block.3} parent=0
    _
  %s5 = ssub.s32 1, %s3
  %s6 = scalar_select 0, %s5, %s3
  // Predicated region
  $region2: #{ernie45_moe_block.3} parent=0 // pred_check
    _
  $region3: #{ernie45_moe_block.3} parent=0 // pred_check_branch
    %8 = sbr.rel (0) target = $region5
  $region4: #{ernie45_moe_block.3} parent=0 // pred_region
    _
  $region5: #{ernie45_moe_block.3} parent=0 // pred_fallthru
    _
  // Predicated region
  $region6: #{ernie45_moe_block.3} parent=0 // pred_check
    _
  $region7: #{ernie45_moe_block.3} parent=0 // pred_check_branch
    %10 = sbr.rel (0) target = $region9
  $region8: #{ernie45_moe_block.3} parent=0 // pred_region
    _
  $region9: #{ernie45_moe_block.3} parent=0 // pred_fallthru
    _
  %v11 = vld [vmem:[%s0] sm:$0xff]
  %v12 = vld [vmem:[%s0 + $0x8] sm:$0xff]
  %v13 = vld [vmem:[%s1] sm:$0xff]
  %v14 = vld [vmem:[%s1 + $0x8] sm:$0xff]
  %v15 = vld [vmem:[%s1 + $0x10] sm:$0xff]
  %v16 = vld [vmem:[%s1 + $0x18] sm:$0xff]
  %vm17 = vcmask 261120
  %v19 = vsel %vm17, %v11, 0
  %v22 = vsel %vm17, %v12, 0
  %24 = vmatprep.subr.mxu0 0.0
  %25 = vmatpush1.msra.mxu0 %v13
  %26 = vmatprep.subr.mxu0 0.0
  %27 = vmatpush1.msra.mxu0 %v14
  %28 = vmatprep.subr.mxu0 0.0
  %29 = vmatpush1.msra.mxu0 %v15
  %30 = vmatprep.subr.mxu0 0.0
  %31 = vmatpush1.msra.mxu0 %v16
  %32 = vmatprep.subr.mxu0 0.0
  %33 = vmatpush1.msra.mxu0 0.0
  %34 = vmatprep.subr.mxu0 0.0
  %35 = vmatpush1.msra.mxu0 0.0
  %36 = vmatprep.subr.mxu0 0.0
  %37 = vmatpush1.msra.mxu0 0.0
  %38 = vmatprep.subr.mxu0 0.0
  %39 = vmatpush1.msra.mxu0 0.0
  %40 = vmatprep.subr.mxu0 0.0
  %41 = vmatpush1.msra.mxu0 0.0
  %42 = vmatprep.subr.mxu0 0.0
  %43 = vmatpush1.msra.mxu0 0.0
  %44 = vmatprep.subr.mxu0 0.0
  %45 = vmatpush1.msra.mxu0 0.0
  %46 = vmatprep.subr.mxu0 0.0
  %47 = vmatpush1.msra.mxu0 0.0
  %48 = vmatprep.subr.mxu0 0.0
  %49 = vmatpush1.msra.mxu0 0.0
  %50 = vmatprep.subr.mxu0 0.0
  %51 = vmatpush1.msra.mxu0 0.0
  %52 = vmatprep.subr.mxu0 0.0
  %53 = vmatpush1.msra.mxu0 0.0
  %54 = vmatprep.subr.mxu0 0.0
  %55 = vmatpush1.msra.mxu0 0.0
  %56 = vmatprep.subr.mxu0 0.0
  %57 = vmatpush1.msra.mxu0 0.0
  %58 = vmatprep.subr.mxu0 0.0
  %59 = vmatpush1.msra.mxu0 0.0
  %60 = vmatprep.subr.mxu0 0.0
  %61 = vmatpush1.msra.mxu0 0.0
  %62 = vmatprep.subr.mxu0 0.0
  %63 = vmatpush1.msra.mxu0 0.0
  %64 = vmatprep.subr.mxu0 0.0
  %65 = vmatpush1.msra.mxu0 0.0
  %66 = vmatprep.subr.mxu0 0.0
  %67 = vmatpush1.msra.mxu0 0.0
  %68 = vmatprep.subr.mxu0 0.0
  %69 = vmatpush1.msra.mxu0 0.0
  %70 = vmatprep.subr.mxu0 0.0
  %71 = vmatpush1.msra.mxu0 0.0
  %72 = vmatprep.subr.mxu0 0.0
  %73 = vmatpush1.msra.mxu0 0.0
  %74 = vmatprep.subr.mxu0 0.0
  %75 = vmatpush1.msra.mxu0 0.0
  %76 = vmatprep.subr.mxu0 0.0
  %77 = vmatpush1.msra.mxu0 0.0
  %78 = vmatprep.subr.mxu0 0.0
  %79 = vmatpush1.msra.mxu0 0.0
  %80 = vmatprep.subr.mxu0 0.0
  %81 = vmatpush1.msra.mxu0 0.0
  %82 = vmatprep.subr.mxu0 0.0
  %83 = vmatpush1.msra.mxu0 0.0
  %84 = vmatprep.subr.mxu0 0.0
  %85 = vmatpush1.msra.mxu0 0.0
  %86 = vmatprep.subr.mxu0 0.0
  %87 = vmatpush1.msra.mxu0 0.0
  %88 = vmatprep.mubr.f32.mxu0 0.0
  %89 = vmatmul.mubr.f32.gmra.mrb[0].mxu0 %v19
  %v90 = vpop.f32.mrb[0].mxu0
  %v91 = vadd.f32 0.0, %v90
  %v92 = vpop.f32.mrb[0].mxu0
  %93 = vmatprep.mubr.f32.mxu0 0.0
  %94 = vmatmul.mubr.f32.gmra.mrb[0].mxu0 %v22
  %v95 = vpop.f32.mrb[0].mxu0
  %v96 = vadd.f32 0.0, %v95
  %v97 = vpop.f32.mrb[0].mxu0
  %98 = vdwg.mxu0
  %vm99 = vcmask 64512
  %100 = vst.msk [vmem:[%s2] sm:$0xff] %vm99, %v91
  %101 = vst.msk [vmem:[%s2 + $0x8] sm:$0xff] %vm99, %v96
  // Predicated region
  $region10: #{ernie45_moe_block.3} parent=0 // pred_check
    _
  $region11: #{ernie45_moe_block.3} parent=0 // pred_check_branch
    %103 = sbr.rel (0) target = $region13
  $region12: #{ernie45_moe_block.3} parent=0 // pred_region
    _
  $region13: #{ernie45_moe_block.3} parent=0 // pred_fallthru
    _
  // Predicated region
  $region14: #{ernie45_moe_block.3} parent=0 // pred_check
    _
  $region15: #{ernie45_moe_block.3} parent=0 // pred_check_branch
    %105 = sbr.rel (0) target = $region17
  $region16: #{ernie45_moe_block.3} parent=0 // pred_region
    _
  $region17: #{ernie45_moe_block.3} parent=0 // pred_fallthru
    _

// kernel: ernie45_moe_block.4
$region0: #{ernie45_moe_block.4}
  #allocation0 [shape = 'u32[]', space=smem, size = 0x4, offset = 0x4, fixed_abs, tag = 'smem constant byte address 0x4 - core index']
  #allocation1 [shape = 'u32[144,128]{1,0:T(1,128)}', space=vmem, size = 0x12000, scoped, tag = 'internal scratch']
  %s0 = inlined_call_operand.vmem [shape: f32[16,32], index: 0, kind: input, shape index: {}]
  %s1 = inlined_call_operand.vmem [shape: f32[32,16], index: 1, kind: input, shape index: {}]
  %s2 = inlined_call_operand.vmem [shape: f32[32,16], index: 2, kind: input, shape index: {}]
  %s3 = inlined_call_operand.vmem [shape: f32[16,32], index: 3, kind: input, shape index: {}]
  %s4 = inlined_call_operand.vmem [shape: f32[16,32], index: 4, kind: output, shape index: {}]
  %s5 = sld [smem:[#allocation0]]
  $region26: #{ernie45_moe_block.4} parent=0
    _
  %s7 = ssub.s32 1, %s5
  %s8 = scalar_select 0, %s7, %s5
  // Predicated region
  $region2: #{ernie45_moe_block.4} parent=0 // pred_check
    _
  $region3: #{ernie45_moe_block.4} parent=0 // pred_check_branch
    %10 = sbr.rel (0) target = $region5
  $region4: #{ernie45_moe_block.4} parent=0 // pred_region
    _
  $region5: #{ernie45_moe_block.4} parent=0 // pred_fallthru
    _
  // Predicated region
  $region6: #{ernie45_moe_block.4} parent=0 // pred_check
    _
  $region7: #{ernie45_moe_block.4} parent=0 // pred_check_branch
    %12 = sbr.rel (0) target = $region9
  $region8: #{ernie45_moe_block.4} parent=0 // pred_region
    _
  $region9: #{ernie45_moe_block.4} parent=0 // pred_fallthru
    _
  // Predicated region
  $region10: #{ernie45_moe_block.4} parent=0 // pred_check
    _
  $region11: #{ernie45_moe_block.4} parent=0 // pred_check_branch
    %14 = sbr.rel (0) target = $region13
  $region12: #{ernie45_moe_block.4} parent=0 // pred_region
    _
  $region13: #{ernie45_moe_block.4} parent=0 // pred_fallthru
    _
  // Predicated region
  $region14: #{ernie45_moe_block.4} parent=0 // pred_check
    _
  $region15: #{ernie45_moe_block.4} parent=0 // pred_check_branch
    %16 = sbr.rel (0) target = $region17
  $region16: #{ernie45_moe_block.4} parent=0 // pred_region
    _
  $region17: #{ernie45_moe_block.4} parent=0 // pred_fallthru
    _
  %v17 = vld [vmem:[%s0] sm:$0xff]
  %v18 = vld [vmem:[%s0 + $0x8] sm:$0xff]
  %v19 = vld [vmem:[%s1] sm:$0xff]
  %v20 = vld [vmem:[%s1 + $0x8] sm:$0xff]
  %v21 = vld [vmem:[%s1 + $0x10] sm:$0xff]
  %v22 = vld [vmem:[%s1 + $0x18] sm:$0xff]
  %vm23 = vcmask 261120
  %v25 = vsel %vm23, %v17, 0
  %v28 = vsel %vm23, %v18, 0
  %30 = vmatprep.subr.mxu0 0.0
  %31 = vmatpush1.msra.mxu0 %v19
  %32 = vmatprep.subr.mxu0 0.0
  %33 = vmatpush1.msra.mxu0 %v20
  %34 = vmatprep.subr.mxu0 0.0
  %35 = vmatpush1.msra.mxu0 %v21
  %36 = vmatprep.subr.mxu0 0.0
  %37 = vmatpush1.msra.mxu0 %v22
  %38 = vmatprep.subr.mxu0 0.0
  %39 = vmatpush1.msra.mxu0 0.0
  %40 = vmatprep.subr.mxu0 0.0
  %41 = vmatpush1.msra.mxu0 0.0
  %42 = vmatprep.subr.mxu0 0.0
  %43 = vmatpush1.msra.mxu0 0.0
  %44 = vmatprep.subr.mxu0 0.0
  %45 = vmatpush1.msra.mxu0 0.0
  %46 = vmatprep.subr.mxu0 0.0
  %47 = vmatpush1.msra.mxu0 0.0
  %48 = vmatprep.subr.mxu0 0.0
  %49 = vmatpush1.msra.mxu0 0.0
  %50 = vmatprep.subr.mxu0 0.0
  %51 = vmatpush1.msra.mxu0 0.0
  %52 = vmatprep.subr.mxu0 0.0
  %53 = vmatpush1.msra.mxu0 0.0
  %54 = vmatprep.subr.mxu0 0.0
  %55 = vmatpush1.msra.mxu0 0.0
  %56 = vmatprep.subr.mxu0 0.0
  %57 = vmatpush1.msra.mxu0 0.0
  %58 = vmatprep.subr.mxu0 0.0
  %59 = vmatpush1.msra.mxu0 0.0
  %60 = vmatprep.subr.mxu0 0.0
  %61 = vmatpush1.msra.mxu0 0.0
  %62 = vmatprep.subr.mxu0 0.0
  %63 = vmatpush1.msra.mxu0 0.0
  %64 = vmatprep.subr.mxu0 0.0
  %65 = vmatpush1.msra.mxu0 0.0
  %66 = vmatprep.subr.mxu0 0.0
  %67 = vmatpush1.msra.mxu0 0.0
  %68 = vmatprep.subr.mxu0 0.0
  %69 = vmatpush1.msra.mxu0 0.0
  %70 = vmatprep.subr.mxu0 0.0
  %71 = vmatpush1.msra.mxu0 0.0
  %72 = vmatprep.subr.mxu0 0.0
  %73 = vmatpush1.msra.mxu0 0.0
  %74 = vmatprep.subr.mxu0 0.0
  %75 = vmatpush1.msra.mxu0 0.0
  %76 = vmatprep.subr.mxu0 0.0
  %77 = vmatpush1.msra.mxu0 0.0
  %78 = vmatprep.subr.mxu0 0.0
  %79 = vmatpush1.msra.mxu0 0.0
  %80 = vmatprep.subr.mxu0 0.0
  %81 = vmatpush1.msra.mxu0 0.0
  %82 = vmatprep.subr.mxu0 0.0
  %83 = vmatpush1.msra.mxu0 0.0
  %84 = vmatprep.subr.mxu0 0.0
  %85 = vmatpush1.msra.mxu0 0.0
  %86 = vmatprep.subr.mxu0 0.0
  %87 = vmatpush1.msra.mxu0 0.0
  %88 = vmatprep.subr.mxu0 0.0
  %89 = vmatpush1.msra.mxu0 0.0
  %90 = vmatprep.subr.mxu0 0.0
  %91 = vmatpush1.msra.mxu0 0.0
  %92 = vmatprep.subr.mxu0 0.0
  %93 = vmatpush1.msra.mxu0 0.0
  %94 = vmatprep.mubr.f32.mxu0 0.0
  %95 = vmatmul.mubr.f32.gmra.mrb[0].mxu0 %v25
  %v96 = vpop.f32.mrb[0].mxu0
  %v97 = vadd.f32 0.0, %v96
  %v98 = vpop.f32.mrb[0].mxu0
  %99 = vmatprep.mubr.f32.mxu0 0.0
  %100 = vmatmul.mubr.f32.gmra.mrb[0].mxu0 %v28
  %v101 = vpop.f32.mrb[0].mxu0
  %v102 = vadd.f32 0.0, %v101
  %v103 = vpop.f32.mrb[0].mxu0
  %104 = vdwg.mxu0
  %v105 = vld [vmem:[%s2] sm:$0xff]
  %v106 = vld [vmem:[%s2 + $0x8] sm:$0xff]
  %v107 = vld [vmem:[%s2 + $0x10] sm:$0xff]
  %v108 = vld [vmem:[%s2 + $0x18] sm:$0xff]
  %109 = vmatprep.subr.mxu0 0.0
  %110 = vmatpush1.msra.mxu0 %v105
  %111 = vmatprep.subr.mxu0 0.0
  %112 = vmatpush1.msra.mxu0 %v106
  %113 = vmatprep.subr.mxu0 0.0
  %114 = vmatpush1.msra.mxu0 %v107
  %115 = vmatprep.subr.mxu0 0.0
  %116 = vmatpush1.msra.mxu0 %v108
  %117 = vmatprep.subr.mxu0 0.0
  %118 = vmatpush1.msra.mxu0 0.0
  %119 = vmatprep.subr.mxu0 0.0
  %120 = vmatpush1.msra.mxu0 0.0
  %121 = vmatprep.subr.mxu0 0.0
  %122 = vmatpush1.msra.mxu0 0.0
  %123 = vmatprep.subr.mxu0 0.0
  %124 = vmatpush1.msra.mxu0 0.0
  %125 = vmatprep.subr.mxu0 0.0
  %126 = vmatpush1.msra.mxu0 0.0
  %127 = vmatprep.subr.mxu0 0.0
  %128 = vmatpush1.msra.mxu0 0.0
  %129 = vmatprep.subr.mxu0 0.0
  %130 = vmatpush1.msra.mxu0 0.0
  %131 = vmatprep.subr.mxu0 0.0
  %132 = vmatpush1.msra.mxu0 0.0
  %133 = vmatprep.subr.mxu0 0.0
  %134 = vmatpush1.msra.mxu0 0.0
  %135 = vmatprep.subr.mxu0 0.0
  %136 = vmatpush1.msra.mxu0 0.0
  %137 = vmatprep.subr.mxu0 0.0
  %138 = vmatpush1.msra.mxu0 0.0
  %139 = vmatprep.subr.mxu0 0.0
  %140 = vmatpush1.msra.mxu0 0.0
  %141 = vmatprep.subr.mxu0 0.0
  %142 = vmatpush1.msra.mxu0 0.0
  %143 = vmatprep.subr.mxu0 0.0
  %144 = vmatpush1.msra.mxu0 0.0
  %145 = vmatprep.subr.mxu0 0.0
  %146 = vmatpush1.msra.mxu0 0.0
  %147 = vmatprep.subr.mxu0 0.0
  %148 = vmatpush1.msra.mxu0 0.0
  %149 = vmatprep.subr.mxu0 0.0
  %150 = vmatpush1.msra.mxu0 0.0
  %151 = vmatprep.subr.mxu0 0.0
  %152 = vmatpush1.msra.mxu0 0.0
  %153 = vmatprep.subr.mxu0 0.0
  %154 = vmatpush1.msra.mxu0 0.0
  %155 = vmatprep.subr.mxu0 0.0
  %156 = vmatpush1.msra.mxu0 0.0
  %157 = vmatprep.subr.mxu0 0.0
  %158 = vmatpush1.msra.mxu0 0.0
  %159 = vmatprep.subr.mxu0 0.0
  %160 = vmatpush1.msra.mxu0 0.0
  %161 = vmatprep.subr.mxu0 0.0
  %162 = vmatpush1.msra.mxu0 0.0
  %163 = vmatprep.subr.mxu0 0.0
  %164 = vmatpush1.msra.mxu0 0.0
  %165 = vmatprep.subr.mxu0 0.0
  %166 = vmatpush1.msra.mxu0 0.0
  %167 = vmatprep.subr.mxu0 0.0
  %168 = vmatpush1.msra.mxu0 0.0
  %169 = vmatprep.subr.mxu0 0.0
  %170 = vmatpush1.msra.mxu0 0.0
  %171 = vmatprep.subr.mxu0 0.0
  %172 = vmatpush1.msra.mxu0 0.0
  %173 = vmatprep.mubr.f32.mxu0 0.0
  %174 = vmatmul.mubr.f32.gmra.mrb[0].mxu0 %v25
  %v175 = vpop.f32.mrb[0].mxu0
  %v176 = vadd.f32 0.0, %v175
  %v177 = vpop.f32.mrb[0].mxu0
  %178 = vmatprep.mubr.f32.mxu0 0.0
  %179 = vmatmul.mubr.f32.gmra.mrb[0].mxu0 %v28
  %v180 = vpop.f32.mrb[0].mxu0
  %v181 = vadd.f32 0.0, %v180
  %v182 = vpop.f32.mrb[0].mxu0
  %183 = vdwg.mxu0
  %v184 = vxor.u32 %v97, 2147483648
  %v185 = vxor.u32 %v102, 2147483648
  %v186 = vmul.f32 %v184, 1.442695
  %v187 = vpow.pop %v186
  %v188 = vmul.f32 %v185, 1.442695
  %v189 = vpow.pop %v188
  %v190 = vadd.f32 %v187, 1.0
  %v191 = vadd.f32 %v189, 1.0
  %v192 = vrcp.pop %v190
  %v193 = vmul.f32 1.0, %v192
  %v194 = vrcp.pop %v191
  %v195 = vmul.f32 1.0, %v194
  %v196 = vmul.f32 %v97, %v193
  %v197 = vmul.f32 %v102, %v195
  %v198 = vmul.f32 %v196, %v176
  %v199 = vmul.f32 %v197, %v181
  %v200 = vld [vmem:[%s3] sm:$0xff]
  %v201 = vld [vmem:[%s3 + $0x8] sm:$0xff]
  %vm202 = vcmask 130048
  %v204 = vsel %vm202, %v198, 0
  %v207 = vsel %vm202, %v199, 0
  %209 = vmatprep.subr.mxu0 0.0
  %210 = vmatpush1.msra.mxu0 %v200
  %211 = vmatprep.subr.mxu0 0.0
  %212 = vmatpush1.msra.mxu0 %v201
  %213 = vmatprep.subr.mxu0 0.0
  %214 = vmatpush1.msra.mxu0 0.0
  %215 = vmatprep.subr.mxu0 0.0
  %216 = vmatpush1.msra.mxu0 0.0
  %217 = vmatprep.subr.mxu0 0.0
  %218 = vmatpush1.msra.mxu0 0.0
  %219 = vmatprep.subr.mxu0 0.0
  %220 = vmatpush1.msra.mxu0 0.0
  %221 = vmatprep.subr.mxu0 0.0
  %222 = vmatpush1.msra.mxu0 0.0
  %223 = vmatprep.subr.mxu0 0.0
  %224 = vmatpush1.msra.mxu0 0.0
  %225 = vmatprep.subr.mxu0 0.0
  %226 = vmatpush1.msra.mxu0 0.0
  %227 = vmatprep.subr.mxu0 0.0
  %228 = vmatpush1.msra.mxu0 0.0
  %229 = vmatprep.subr.mxu0 0.0
  %230 = vmatpush1.msra.mxu0 0.0
  %231 = vmatprep.subr.mxu0 0.0
  %232 = vmatpush1.msra.mxu0 0.0
  %233 = vmatprep.subr.mxu0 0.0
  %234 = vmatpush1.msra.mxu0 0.0
  %235 = vmatprep.subr.mxu0 0.0
  %236 = vmatpush1.msra.mxu0 0.0
  %237 = vmatprep.subr.mxu0 0.0
  %238 = vmatpush1.msra.mxu0 0.0
  %239 = vmatprep.subr.mxu0 0.0
  %240 = vmatpush1.msra.mxu0 0.0
  %241 = vmatprep.subr.mxu0 0.0
  %242 = vmatpush1.msra.mxu0 0.0
  %243 = vmatprep.subr.mxu0 0.0
  %244 = vmatpush1.msra.mxu0 0.0
  %245 = vmatprep.subr.mxu0 0.0
  %246 = vmatpush1.msra.mxu0 0.0
  %247 = vmatprep.subr.mxu0 0.0
  %248 = vmatpush1.msra.mxu0 0.0
  %249 = vmatprep.subr.mxu0 0.0
  %250 = vmatpush1.msra.mxu0 0.0
  %251 = vmatprep.subr.mxu0 0.0
  %252 = vmatpush1.msra.mxu0 0.0
  %253 = vmatprep.subr.mxu0 0.0
  %254 = vmatpush1.msra.mxu0 0.0
  %255 = vmatprep.subr.mxu0 0.0
  %256 = vmatpush1.msra.mxu0 0.0
  %257 = vmatprep.subr.mxu0 0.0
  %258 = vmatpush1.msra.mxu0 0.0
  %259 = vmatprep.subr.mxu0 0.0
  %260 = vmatpush1.msra.mxu0 0.0
  %261 = vmatprep.subr.mxu0 0.0
  %262 = vmatpush1.msra.mxu0 0.0
  %263 = vmatprep.subr.mxu0 0.0
  %264 = vmatpush1.msra.mxu0 0.0
  %265 = vmatprep.subr.mxu0 0.0
  %266 = vmatpush1.msra.mxu0 0.0
  %267 = vmatprep.subr.mxu0 0.0
  %268 = vmatpush1.msra.mxu0 0.0
  %269 = vmatprep.subr.mxu0 0.0
  %270 = vmatpush1.msra.mxu0 0.0
  %271 = vmatprep.subr.mxu0 0.0
  %272 = vmatpush1.msra.mxu0 0.0
  %273 = vmatprep.mubr.f32.mxu0 0.0
  %274 = vmatmul.mubr.f32.gmra.mrb[0].mxu0 %v204
  %v275 = vpop.f32.mrb[0].mxu0
  %v276 = vadd.f32 0.0, %v275
  %v277 = vpop.f32.mrb[0].mxu0
  %278 = vmatprep.mubr.f32.mxu0 0.0
  %279 = vmatmul.mubr.f32.gmra.mrb[0].mxu0 %v207
  %v280 = vpop.f32.mrb[0].mxu0
  %v281 = vadd.f32 0.0, %v280
  %v282 = vpop.f32.mrb[0].mxu0
  %283 = vdwg.mxu0
  %284 = vst.msk [vmem:[%s4] sm:$0xff] %vm23, %v276
  %285 = vst.msk [vmem:[%s4 + $0x8] sm:$0xff] %vm23, %v281
  // Predicated region
  $region18: #{ernie45_moe_block.4} parent=0 // pred_check
    _
  $region19: #{ernie45_moe_block.4} parent=0 // pred_check_branch
    %287 = sbr.rel (0) target = $region21
  $region20: #{ernie45_moe_block.4} parent=0 // pred_region
    _
  $region21: #{ernie45_moe_block.4} parent=0 // pred_fallthru
    _
  // Predicated region
  $region22: #{ernie45_moe_block.4} parent=0 // pred_check
    _
  $region23: #{ernie45_moe_block.4} parent=0 // pred_check_branch
    %289 = sbr.rel (0) target = $region25
  $region24: #{ernie45_moe_block.4} parent=0 // pred_region
    _
  $region25: #{ernie45_moe_block.4} parent=0 // pred_fallthru
    _

// kernel: ernie45_moe_block.5
$region0: #{ernie45_moe_block.5}
  #allocation0 [shape = 'u32[]', space=smem, size = 0x4, offset = 0x4, fixed_abs, tag = 'smem constant byte address 0x4 - core index']
  #allocation1 [shape = 'u32[144,128]{1,0:T(1,128)}', space=vmem, size = 0x12000, scoped, tag = 'internal scratch']
  #allocation2 [shape = 'f32[128,32]{1,0:T(8,128)}', space=vmem, size = 0x10000, scoped, tag = 'scratch operand']
  #allocation3 [shape = 's32[1]{0}', space=sflag, size = 0x4, scoped, tag = 'scoped memory for ernie45_moe_block.5']
  #allocation4 [shape = 'u8[512]{0}', space=smem, size = 0x200, scoped, tag = 'prefetched SMEM operand 0']
  #allocation5 [shape = 'u8[512]{0}', space=smem, size = 0x200, scoped, tag = 'prefetched SMEM operand 1']
  %s0 = inlined_call_operand.vmem [shape: s32[9], index: 0, kind: input, shape index: {}]
  %s1 = inlined_call_operand.vmem [shape: s32[9], index: 1, kind: input, shape index: {}]
  %s2 = inlined_call_operand.vmem [shape: f32[1152,32], index: 2, kind: input, shape index: {}]
  %s3 = inlined_call_operand.vmem [shape: f32[1152,1], index: 3, kind: input, shape index: {}]
  %s4 = inlined_call_operand.vmem [shape: f32[8,32,16], index: 4, kind: input, shape index: {}]
  %s5 = inlined_call_operand.vmem [shape: f32[8,32,16], index: 5, kind: input, shape index: {}]
  %s6 = inlined_call_operand.vmem [shape: f32[8,16,32], index: 6, kind: input, shape index: {}]
  %s7 = inlined_call_operand.vmem [shape: f32[1152,32], index: 7, kind: output, shape index: {}]
  %s8 = sld [smem:[#allocation0]]
  $region69: #{ernie45_moe_block.5} parent=0
    _
  %s10 = ssub.s32 1, %s8
  %s11 = scalar_select 0, %s10, %s8
  %s12 = sshll.u32 %s0, 4
  %s13 = int_to_ptr.vmem [resolvable:$true] %s12
  %15 = dma.vmem_to_smem %s13, 16, [#allocation4], [#allocation3]
  %s16 = sshll.u32 %s1, 4
  %s17 = int_to_ptr.vmem [resolvable:$true] %s16
  %19 = dma.vmem_to_smem %s17, 16, [#allocation5], [#allocation3]
  %20 = dma.done [#allocation3], 32
  %21 = sfence
  loop: start=0, step=1, limit=11
  $region2: #{ernie45_moe_block.5} parent=0 // loop_pre_header
    _
  $region3: #{ernie45_moe_block.5} parent=0 // loop_header
    %s23 = sphi 0, %s27
    %p24 = scmp.ge.s32.totalorder %s23, 11
    %s30 = sphi 0, %s42
    %s31 = sphi 0, %s38
    %s32 = sphi 0, %s30
    %s33 = sphi 0, %s31
    %s34 = sphi 0, %s32
    %s35 = sphi 0, %s33
    %s45 = sphi 0, %s47
    %s48 = sphi 0, %s45
    %s49 = sphi 0, %s48
    %s65 = sphi 0, %s49
    %s71 = sphi 0, %s73
    %s74 = sphi 0, %s71
    %s75 = sphi 0, %s74
    %s91 = sphi 0, %s75
    %s101 = sphi 0, %s103
    %s104 = sphi 0, %s101
    %s105 = sphi 0, %s104
    %s121 = sphi 0, %s105
    %s131 = sphi 0, %s133
    %s134 = sphi 0, %s131
    %s135 = sphi 0, %s134
    %s151 = sphi 0, %s135
    %s161 = sphi 0, %s163
    %s164 = sphi 0, %s161
    %s165 = sphi 0, %s164
    %s181 = sphi 0, %s165
    %s187 = sphi 0, %s189
    %s190 = sphi 0, %s187
    %s191 = sphi 0, %s190
    %s207 = sphi 0, %s191
  $region4: #{ernie45_moe_block.5} parent=0 // loop_header_branch
    %26 = sbr.rel (%p24) target = $region8
  $region5: #{ernie45_moe_block.5} parent=0 // loop_body
    %s28 = ssub.s32 %s23, 1
    %s29 = ssub.s32 %s23, 2
    %s36 = sadd.s32 1, %s31
    %p37 = scmp.ge.s32.totalorder %s36, 1
    %s38 = scalar_select %p37, 0, %s36
    %s39 = sadd.s32 1, %s30
    %s40 = scalar_select %p37, %s39, %s30
    %p41 = scmp.ge.s32.totalorder %s40, 9
    %s42 = scalar_select %p41, 0, %s40
    %s43 = ssub.s32 %s30, %s42
    %p44 = scmp.eq.s32.totalorder %s43, 0
    %s46 = sadd.s32 %s45, 1
    %s47 = scalar_select %p44, %s45, %s46
    %p50 = pneg %p44
    %p51 = scmp.eq.s32.totalorder %s23, 8
    %p52 = por %p50, %p51
    %p53 = scmp.ne.s32.totalorder %s45, %s48
    %p54 = scmp.eq.s32.totalorder %s23, 0
    %p55 = por %p53, %p54
    %p56 = scmp.ne.s32.totalorder %s45, %s48
    %p57 = scmp.eq.s32.totalorder %s28, 8
    %p58 = por %p56, %p57
    %p59 = scmp.ne.s32.totalorder %s48, %s49
    %p60 = scmp.eq.s32.totalorder %s28, 0
    %p61 = por %p59, %p60
    %p62 = scmp.ne.s32.totalorder %s48, %s49
    %p63 = scmp.eq.s32.totalorder %s29, 8
    %p64 = por %p62, %p63
    %p66 = scmp.ne.s32.totalorder %s49, %s65
    %p67 = scmp.eq.s32.totalorder %s29, 0
    %p68 = por %p66, %p67
    %s69 = ssub.s32 %s30, %s42
    %p70 = scmp.eq.s32.totalorder %s69, 0
    %s72 = sadd.s32 %s71, 1
    %s73 = scalar_select %p70, %s71, %s72
    %p76 = pneg %p70
    %p77 = scmp.eq.s32.totalorder %s23, 8
    %p78 = por %p76, %p77
    %p79 = scmp.ne.s32.totalorder %s71, %s74
    %p80 = scmp.eq.s32.totalorder %s23, 0
    %p81 = por %p79, %p80
    %p82 = scmp.ne.s32.totalorder %s71, %s74
    %p83 = scmp.eq.s32.totalorder %s28, 8
    %p84 = por %p82, %p83
    %p85 = scmp.ne.s32.totalorder %s74, %s75
    %p86 = scmp.eq.s32.totalorder %s28, 0
    %p87 = por %p85, %p86
    %p88 = scmp.ne.s32.totalorder %s74, %s75
    %p89 = scmp.eq.s32.totalorder %s29, 8
    %p90 = por %p88, %p89
    %p92 = scmp.ne.s32.totalorder %s75, %s91
    %p93 = scmp.eq.s32.totalorder %s29, 0
    %p94 = por %p92, %p93
    %s95 = sld [smem:[#allocation4 + %s30]]
    %s96 = sld [smem:[#allocation4 + %s42]]
    %s97 = ssub.s32 %s95, %s96
    %s98 = ssub.s32 %s31, %s38
    %s99 = sor.u32 %s97, %s98
    %p100 = scmp.eq.s32.totalorder %s99, 0
    %s102 = sadd.s32 %s101, 1
    %s103 = scalar_select %p100, %s101, %s102
    %p106 = pneg %p100
    %p107 = scmp.eq.s32.totalorder %s23, 8
    %p108 = por %p106, %p107
    %p109 = scmp.ne.s32.totalorder %s101, %s104
    %p110 = scmp.eq.s32.totalorder %s23, 0
    %p111 = por %p109, %p110
    %p112 = scmp.ne.s32.totalorder %s101, %s104
    %p113 = scmp.eq.s32.totalorder %s28, 8
    %p114 = por %p112, %p113
    %p115 = scmp.ne.s32.totalorder %s104, %s105
    %p116 = scmp.eq.s32.totalorder %s28, 0
    %p117 = por %p115, %p116
    %p118 = scmp.ne.s32.totalorder %s104, %s105
    %p119 = scmp.eq.s32.totalorder %s29, 8
    %p120 = por %p118, %p119
    %p122 = scmp.ne.s32.totalorder %s105, %s121
    %p123 = scmp.eq.s32.totalorder %s29, 0
    %p124 = por %p122, %p123
    %s125 = sld [smem:[#allocation4 + %s30]]
    %s126 = sld [smem:[#allocation4 + %s42]]
    %s127 = ssub.s32 %s125, %s126
    %s128 = ssub.s32 %s31, %s38
    %s129 = sor.u32 %s127, %s128
    %p130 = scmp.eq.s32.totalorder %s129, 0
    %s132 = sadd.s32 %s131, 1
    %s133 = scalar_select %p130, %s131, %s132
    %p136 = pneg %p130
    %p137 = scmp.eq.s32.totalorder %s23, 8
    %p138 = por %p136, %p137
    %p139 = scmp.ne.s32.totalorder %s131, %s134
    %p140 = scmp.eq.s32.totalorder %s23, 0
    %p141 = por %p139, %p140
    %p142 = scmp.ne.s32.totalorder %s131, %s134
    %p143 = scmp.eq.s32.totalorder %s28, 8
    %p144 = por %p142, %p143
    %p145 = scmp.ne.s32.totalorder %s134, %s135
    %p146 = scmp.eq.s32.totalorder %s28, 0
    %p147 = por %p145, %p146
    %p148 = scmp.ne.s32.totalorder %s134, %s135
    %p149 = scmp.eq.s32.totalorder %s29, 8
    %p150 = por %p148, %p149
    %p152 = scmp.ne.s32.totalorder %s135, %s151
    %p153 = scmp.eq.s32.totalorder %s29, 0
    %p154 = por %p152, %p153
    %s155 = sld [smem:[#allocation4 + %s30]]
    %s156 = sld [smem:[#allocation4 + %s42]]
    %s157 = ssub.s32 %s155, %s156
    %s158 = ssub.s32 %s31, %s38
    %s159 = sor.u32 %s157, %s158
    %p160 = scmp.eq.s32.totalorder %s159, 0
    %s162 = sadd.s32 %s161, 1
    %s163 = scalar_select %p160, %s161, %s162
    %p166 = pneg %p160
    %p167 = scmp.eq.s32.totalorder %s23, 8
    %p168 = por %p166, %p167
    %p169 = scmp.ne.s32.totalorder %s161, %s164
    %p170 = scmp.eq.s32.totalorder %s23, 0
    %p171 = por %p169, %p170
    %p172 = scmp.ne.s32.totalorder %s161, %s164
    %p173 = scmp.eq.s32.totalorder %s28, 8
    %p174 = por %p172, %p173
    %p175 = scmp.ne.s32.totalorder %s164, %s165
    %p176 = scmp.eq.s32.totalorder %s28, 0
    %p177 = por %p175, %p176
    %p178 = scmp.ne.s32.totalorder %s164, %s165
    %p179 = scmp.eq.s32.totalorder %s29, 8
    %p180 = por %p178, %p179
    %p182 = scmp.ne.s32.totalorder %s165, %s181
    %p183 = scmp.eq.s32.totalorder %s29, 0
    %p184 = por %p182, %p183
    %s185 = ssub.s32 %s30, %s42
    %p186 = scmp.eq.s32.totalorder %s185, 0
    %s188 = sadd.s32 %s187, 1
    %s189 = scalar_select %p186, %s187, %s188
    %p192 = pneg %p186
    %p193 = scmp.eq.s32.totalorder %s23, 8
    %p194 = por %p192, %p193
    %p195 = scmp.ne.s32.totalorder %s187, %s190
    %p196 = scmp.eq.s32.totalorder %s23, 0
    %p197 = por %p195, %p196
    %p198 = scmp.ne.s32.totalorder %s187, %s190
    %p199 = scmp.eq.s32.totalorder %s28, 8
    %p200 = por %p198, %p199
    %p201 = scmp.ne.s32.totalorder %s190, %s191
    %p202 = scmp.eq.s32.totalorder %s28, 0
    %p203 = por %p201, %p202
    %p204 = scmp.ne.s32.totalorder %s190, %s191
    %p205 = scmp.eq.s32.totalorder %s29, 8
    %p206 = por %p204, %p205
    %p208 = scmp.ne.s32.totalorder %s191, %s207
    %p209 = scmp.eq.s32.totalorder %s29, 0
    %p210 = por %p208, %p209
    %p211 = scmp.le.s32.totalorder 1, %s23
    %p212 = scmp.lt.s32.totalorder %s23, 10
    %p213 = pnand %p211, %p212
    %p214 = pneg %p213
    // Predicated region
    $region9: #{ernie45_moe_block.5} parent=5 // pred_check
      _
    $region10: #{ernie45_moe_block.5} parent=5 // pred_check_branch
      %216 = sbr.rel (%p213) target = $region12
    $region11: #{ernie45_moe_block.5} parent=5 // pred_region
      %s217 = ssub.s32 %s23, 1
    $region12: #{ernie45_moe_block.5} parent=5 // pred_fallthru
      _
    %p218 = scmp.lt.s32.totalorder %s23, 9
    // Predicated region
    $region13: #{ernie45_moe_block.5} parent=5 // pred_check
      %p219 = pneg %p218
    $region14: #{ernie45_moe_block.5} parent=5 // pred_check_branch
      %221 = sbr.rel (%p219) target = $region16
    $region15: #{ernie45_moe_block.5} parent=5 // pred_region
      // Predicated region
      $region17: #{ernie45_moe_block.5} parent=15 // pred_check
        %p222 = pneg %p55
      $region18: #{ernie45_moe_block.5} parent=15 // pred_check_branch
        %224 = sbr.rel (%p222) target = $region20
      $region19: #{ernie45_moe_block.5} parent=15 // pred_region
        %s225 = smul.u32 16, %s30
        %p226 = scmp.lt.s32.totalorder %s225, 143
        %s227 = scalar_select %p226, %s225, 143
        %s228 = smul.addr %s227, 8
        %s229 = scalar_lea.vmem %s2, %s228
        %s230 = smul.u32 16, %s30
      $region20: #{ernie45_moe_block.5} parent=15 // pred_fallthru
        _
      // Predicated region
      $region21: #{ernie45_moe_block.5} parent=15 // pred_check
        %p231 = pneg %p81
      $region22: #{ernie45_moe_block.5} parent=15 // pred_check_branch
        %233 = sbr.rel (%p231) target = $region24
      $region23: #{ernie45_moe_block.5} parent=15 // pred_region
        %s234 = smul.u32 16, %s30
        %p235 = scmp.lt.s32.totalorder %s234, 143
        %s236 = scalar_select %p235, %s234, 143
        %s237 = smul.addr %s236, 8
        %s238 = scalar_lea.vmem %s3, %s237
        %s239 = smul.u32 16, %s30
      $region24: #{ernie45_moe_block.5} parent=15 // pred_fallthru
        _
      // Predicated region
      $region25: #{ernie45_moe_block.5} parent=15 // pred_check
        %p240 = pneg %p111
      $region26: #{ernie45_moe_block.5} parent=15 // pred_check_branch
        %242 = sbr.rel (%p240) target = $region28
      $region27: #{ernie45_moe_block.5} parent=15 // pred_region
        %s243 = sld [smem:[#allocation4 + %s30]]
        %p244 = scmp.lt.s32.totalorder %s243, 7
        %s245 = scalar_select %p244, %s243, 7
        %p246 = scmp.lt.s32.totalorder %s31, 0
        %s247 = scalar_select %p246, %s31, 0
        %s248 = smul.addr %s245, 4
        %s249 = sadd.s32 %s247, %s248
        %s250 = smul.addr %s249, 8
        %s251 = scalar_lea.vmem %s4, %s250
        %s252 = sld [smem:[#allocation4 + %s30]]
      $region28: #{ernie45_moe_block.5} parent=15 // pred_fallthru
        _
      // Predicated region
      $region29: #{ernie45_moe_block.5} parent=15 // pred_check
        %p253 = pneg %p141
      $region30: #{ernie45_moe_block.5} parent=15 // pred_check_branch
        %255 = sbr.rel (%p253) target = $region32
      $region31: #{ernie45_moe_block.5} parent=15 // pred_region
        %s256 = sld [smem:[#allocation4 + %s30]]
        %p257 = scmp.lt.s32.totalorder %s256, 7
        %s258 = scalar_select %p257, %s256, 7
        %p259 = scmp.lt.s32.totalorder %s31, 0
        %s260 = scalar_select %p259, %s31, 0
        %s261 = smul.addr %s258, 4
        %s262 = sadd.s32 %s260, %s261
        %s263 = smul.addr %s262, 8
        %s264 = scalar_lea.vmem %s5, %s263
        %s265 = sld [smem:[#allocation4 + %s30]]
      $region32: #{ernie45_moe_block.5} parent=15 // pred_fallthru
        _
      // Predicated region
      $region33: #{ernie45_moe_block.5} parent=15 // pred_check
        %p266 = pneg %p171
      $region34: #{ernie45_moe_block.5} parent=15 // pred_check_branch
        %268 = sbr.rel (%p266) target = $region36
      $region35: #{ernie45_moe_block.5} parent=15 // pred_region
        %s269 = sld [smem:[#allocation4 + %s30]]
        %s270 = smul.u32 2, %s31
        %p271 = scmp.lt.s32.totalorder %s269, 7
        %s272 = scalar_select %p271, %s269, 7
        %p273 = scmp.lt.s32.totalorder %s270, 1
        %s274 = scalar_select %p273, %s270, 1
        %s275 = smul.addr %s272, 2
        %s276 = sadd.s32 %s274, %s275
        %s277 = smul.addr %s276, 8
        %s278 = scalar_lea.vmem %s6, %s277
        %s279 = sld [smem:[#allocation4 + %s30]]
        %s280 = smul.u32 2, %s31
      $region36: #{ernie45_moe_block.5} parent=15 // pred_fallthru
        _
    $region16: #{ernie45_moe_block.5} parent=5 // pred_fallthru
      _
    %p281 = scmp.le.s32.totalorder 1, %s23
    %p282 = scmp.lt.s32.totalorder %s23, 10
    %p283 = pnand %p281, %p282
    %p284 = pneg %p283
    // Predicated region
    $region37: #{ernie45_moe_block.5} parent=5 // pred_check
      _
    $region38: #{ernie45_moe_block.5} parent=5 // pred_check_branch
      %286 = sbr.rel (%p283) target = $region40
    $region39: #{ernie45_moe_block.5} parent=5 // pred_region
      %s287 = ssub.s32 %s23, 1
      %s288 = smul.u32 16, %s32
      %p289 = scmp.lt.s32.totalorder %s288, 143
      %s290 = scalar_select %p289, %s288, 143
      %s291 = smul.addr %s290, 8
      %s292 = scalar_lea.vmem %s2, %s291
      %p293 = pneg %p61
      %p294 = pneg %p58
      %s295 = smul.u32 16, %s32
      %p296 = scmp.lt.s32.totalorder %s295, 143
      %s297 = scalar_select %p296, %s295, 143
      %s298 = smul.addr %s297, 8
      %s299 = scalar_lea.vmem %s3, %s298
      %p300 = pneg %p87
      %p301 = pneg %p84
      %s302 = sld [smem:[#allocation4 + %s32]]
      %p303 = scmp.lt.s32.totalorder %s302, 7
      %s304 = scalar_select %p303, %s302, 7
      %p305 = scmp.lt.s32.totalorder %s33, 0
      %s306 = scalar_select %p305, %s33, 0
      %s307 = smul.addr %s304, 4
      %s308 = sadd.s32 %s306, %s307
      %s309 = smul.addr %s308, 8
      %s310 = scalar_lea.vmem %s4, %s309
      %p311 = pneg %p117
      %p312 = pneg %p114
      %s313 = sld [smem:[#allocation4 + %s32]]
      %p314 = scmp.lt.s32.totalorder %s313, 7
      %s315 = scalar_select %p314, %s313, 7
      %p316 = scmp.lt.s32.totalorder %s33, 0
      %s317 = scalar_select %p316, %s33, 0
      %s318 = smul.addr %s315, 4
      %s319 = sadd.s32 %s317, %s318
      %s320 = smul.addr %s319, 8
      %s321 = scalar_lea.vmem %s5, %s320
      %p322 = pneg %p147
      %p323 = pneg %p144
      %s324 = sld [smem:[#allocation4 + %s32]]
      %s325 = smul.u32 2, %s33
      %p326 = scmp.lt.s32.totalorder %s324, 7
      %s327 = scalar_select %p326, %s324, 7
      %p328 = scmp.lt.s32.totalorder %s325, 1
      %s329 = scalar_select %p328, %s325, 1
      %s330 = smul.addr %s327, 2
      %s331 = sadd.s32 %s329, %s330
      %s332 = smul.addr %s331, 8
      %s333 = scalar_lea.vmem %s6, %s332
      %p334 = pneg %p177
      %p335 = pneg %p174
      %p336 = pneg %p203
      %p337 = pneg %p200
      %s338 = smul.u32 16, %s32
      %p339 = scmp.lt.s32.totalorder %s338, 143
      %s340 = scalar_select %p339, %s338, 143
      %s341 = smul.addr %s340, 8
      %s342 = scalar_lea.vmem %s7, %s341
      %s343 = smul.u32 16, %s32
      %p344 = scmp.lt.s32.totalorder %s343, 143
      %s345 = scalar_select %p344, %s343, 143
      %s346 = smul.addr %s345, 8
      %s347 = scalar_lea.vmem %s2, %s346
      %s348 = smul.u32 16, %s32
      %s349 = smul.u32 16, %s32
      %p350 = scmp.lt.s32.totalorder %s349, 143
      %s351 = scalar_select %p350, %s349, 143
      %s352 = smul.addr %s351, 8
      %s353 = scalar_lea.vmem %s3, %s352
      %s354 = smul.u32 16, %s32
      %s355 = sld [smem:[#allocation4 + %s32]]
      %p356 = scmp.lt.s32.totalorder %s355, 7
      %s357 = scalar_select %p356, %s355, 7
      %p358 = scmp.lt.s32.totalorder %s33, 0
      %s359 = scalar_select %p358, %s33, 0
      %s360 = smul.addr %s357, 4
      %s361 = sadd.s32 %s359, %s360
      %s362 = smul.addr %s361, 8
      %s363 = scalar_lea.vmem %s4, %s362
      %s364 = sld [smem:[#allocation4 + %s32]]
      %s365 = sld [smem:[#allocation4 + %s32]]
      %p366 = scmp.lt.s32.totalorder %s365, 7
      %s367 = scalar_select %p366, %s365, 7
      %p368 = scmp.lt.s32.totalorder %s33, 0
      %s369 = scalar_select %p368, %s33, 0
      %s370 = smul.addr %s367, 4
      %s371 = sadd.s32 %s369, %s370
      %s372 = smul.addr %s371, 8
      %s373 = scalar_lea.vmem %s5, %s372
      %s374 = sld [smem:[#allocation4 + %s32]]
      %s375 = sld [smem:[#allocation4 + %s32]]
      %s376 = smul.u32 2, %s33
      %p377 = scmp.lt.s32.totalorder %s375, 7
      %s378 = scalar_select %p377, %s375, 7
      %p379 = scmp.lt.s32.totalorder %s376, 1
      %s380 = scalar_select %p379, %s376, 1
      %s381 = smul.addr %s378, 2
      %s382 = sadd.s32 %s380, %s381
      %s383 = smul.addr %s382, 8
      %s384 = scalar_lea.vmem %s6, %s383
      %s385 = sld [smem:[#allocation4 + %s32]]
      %s386 = smul.u32 2, %s33
      %s387 = smul.u32 16, %s32
      %p388 = scmp.lt.s32.totalorder %s387, 143
      %s389 = scalar_select %p388, %s387, 143
      %s390 = smul.addr %s389, 8
      %s391 = scalar_lea.vmem %s7, %s390
      %s392 = smul.u32 16, %s32
      %s393 = sld [smem:[#allocation5 + %s32]]
      %p394 = scmp.gt.s32.totalorder %s393, 0
      // Predicated region
      $region41: #{ernie45_moe_block.5} parent=39 // pred_check
        %p395 = pneg %p394
      $region42: #{ernie45_moe_block.5} parent=39 // pred_check_branch
        %397 = sbr.rel (%p395) target = $region44
      $region43: #{ernie45_moe_block.5} parent=39 // pred_region
        %p398 = scmp.eq.s32.totalorder %s33, 0
        // Predicated region
        $region45: #{ernie45_moe_block.5} parent=43 // pred_check
          %p399 = pneg %p398
        $region46: #{ernie45_moe_block.5} parent=43 // pred_check_branch
          %401 = sbr.rel (%p399) target = $region48
        $region47: #{ernie45_moe_block.5} parent=43 // pred_region
          %vm402 = vcmask 261120
          %403 = vst.msk [vmem:[#allocation2] sm:$0xff] %vm402, 0.0
          %404 = vst.msk [vmem:[#allocation2 + $0x8] sm:$0xff] %vm402, 0.0
          %405 = vst.msk [vmem:[#allocation2 + $0x10] sm:$0xff] %vm402, 0.0
          %406 = vst.msk [vmem:[#allocation2 + $0x18] sm:$0xff] %vm402, 0.0
          %407 = vst.msk [vmem:[#allocation2 + $0x20] sm:$0xff] %vm402, 0.0
          %408 = vst.msk [vmem:[#allocation2 + $0x28] sm:$0xff] %vm402, 0.0
          %409 = vst.msk [vmem:[#allocation2 + $0x30] sm:$0xff] %vm402, 0.0
          %410 = vst.msk [vmem:[#allocation2 + $0x38] sm:$0xff] %vm402, 0.0
          %411 = vst.msk [vmem:[#allocation2 + $0x40] sm:$0xff] %vm402, 0.0
          %412 = vst.msk [vmem:[#allocation2 + $0x48] sm:$0xff] %vm402, 0.0
          %413 = vst.msk [vmem:[#allocation2 + $0x50] sm:$0xff] %vm402, 0.0
          %414 = vst.msk [vmem:[#allocation2 + $0x58] sm:$0xff] %vm402, 0.0
          %415 = vst.msk [vmem:[#allocation2 + $0x60] sm:$0xff] %vm402, 0.0
          %416 = vst.msk [vmem:[#allocation2 + $0x68] sm:$0xff] %vm402, 0.0
          %417 = vst.msk [vmem:[#allocation2 + $0x70] sm:$0xff] %vm402, 0.0
          %418 = vst.msk [vmem:[#allocation2 + $0x78] sm:$0xff] %vm402, 0.0
        $region48: #{ernie45_moe_block.5} parent=43 // pred_fallthru
          _
        %v419 = vld [vmem:[%s347] sm:$0xff]
        %v420 = vld [vmem:[%s347 + $0x8] sm:$0xff]
        %v421 = vld [vmem:[%s347 + $0x10] sm:$0xff]
        %v422 = vld [vmem:[%s347 + $0x18] sm:$0xff]
        %v423 = vld [vmem:[%s347 + $0x20] sm:$0xff]
        %v424 = vld [vmem:[%s347 + $0x28] sm:$0xff]
        %v425 = vld [vmem:[%s347 + $0x30] sm:$0xff]
        %v426 = vld [vmem:[%s347 + $0x38] sm:$0xff]
        %v427 = vld [vmem:[%s347 + $0x40] sm:$0xff]
        %v428 = vld [vmem:[%s347 + $0x48] sm:$0xff]
        %v429 = vld [vmem:[%s347 + $0x50] sm:$0xff]
        %v430 = vld [vmem:[%s347 + $0x58] sm:$0xff]
        %v431 = vld [vmem:[%s347 + $0x60] sm:$0xff]
        %v432 = vld [vmem:[%s347 + $0x68] sm:$0xff]
        %v433 = vld [vmem:[%s347 + $0x70] sm:$0xff]
        %v434 = vld [vmem:[%s347 + $0x78] sm:$0xff]
        %v435 = vld [vmem:[%s363] sm:$0xff]
        %v436 = vld [vmem:[%s363 + $0x8] sm:$0xff]
        %v437 = vld [vmem:[%s363 + $0x10] sm:$0xff]
        %v438 = vld [vmem:[%s363 + $0x18] sm:$0xff]
        %vm439 = vcmask 261120
        %v441 = vsel %vm439, %v419, 0
        %v444 = vsel %vm439, %v420, 0
        %v447 = vsel %vm439, %v421, 0
        %v450 = vsel %vm439, %v422, 0
        %v453 = vsel %vm439, %v423, 0
        %v456 = vsel %vm439, %v424, 0
        %v459 = vsel %vm439, %v425, 0
        %v462 = vsel %vm439, %v426, 0
        %v465 = vsel %vm439, %v427, 0
        %v468 = vsel %vm439, %v428, 0
        %v471 = vsel %vm439, %v429, 0
        %v474 = vsel %vm439, %v430, 0
        %v477 = vsel %vm439, %v431, 0
        %v480 = vsel %vm439, %v432, 0
        %v483 = vsel %vm439, %v433, 0
        %v486 = vsel %vm439, %v434, 0
        %488 = vmatprep.subr.mxu0 0.0
        %489 = vmatpush1.msra.mxu0 %v435
        %490 = vmatprep.subr.mxu0 0.0
        %491 = vmatpush1.msra.mxu0 %v436
        %492 = vmatprep.subr.mxu0 0.0
        %493 = vmatpush1.msra.mxu0 %v437
        %494 = vmatprep.subr.mxu0 0.0
        %495 = vmatpush1.msra.mxu0 %v438
        %496 = vmatprep.subr.mxu0 0.0
        %497 = vmatpush1.msra.mxu0 0.0
        %498 = vmatprep.subr.mxu0 0.0
        %499 = vmatpush1.msra.mxu0 0.0
        %500 = vmatprep.subr.mxu0 0.0
        %501 = vmatpush1.msra.mxu0 0.0
        %502 = vmatprep.subr.mxu0 0.0
        %503 = vmatpush1.msra.mxu0 0.0
        %504 = vmatprep.subr.mxu0 0.0
        %505 = vmatpush1.msra.mxu0 0.0
        %506 = vmatprep.subr.mxu0 0.0
        %507 = vmatpush1.msra.mxu0 0.0
        %508 = vmatprep.subr.mxu0 0.0
        %509 = vmatpush1.msra.mxu0 0.0
        %510 = vmatprep.subr.mxu0 0.0
        %511 = vmatpush1.msra.mxu0 0.0
        %512 = vmatprep.subr.mxu0 0.0
        %513 = vmatpush1.msra.mxu0 0.0
        %514 = vmatprep.subr.mxu0 0.0
        %515 = vmatpush1.msra.mxu0 0.0
        %516 = vmatprep.subr.mxu0 0.0
        %517 = vmatpush1.msra.mxu0 0.0
        %518 = vmatprep.subr.mxu0 0.0
        %519 = vmatpush1.msra.mxu0 0.0
        %520 = vmatprep.subr.mxu0 0.0
        %521 = vmatpush1.msra.mxu0 0.0
        %522 = vmatprep.subr.mxu0 0.0
        %523 = vmatpush1.msra.mxu0 0.0
        %524 = vmatprep.subr.mxu0 0.0
        %525 = vmatpush1.msra.mxu0 0.0
        %526 = vmatprep.subr.mxu0 0.0
        %527 = vmatpush1.msra.mxu0 0.0
        %528 = vmatprep.subr.mxu0 0.0
        %529 = vmatpush1.msra.mxu0 0.0
        %530 = vmatprep.subr.mxu0 0.0
        %531 = vmatpush1.msra.mxu0 0.0
        %532 = vmatprep.subr.mxu0 0.0
        %533 = vmatpush1.msra.mxu0 0.0
        %534 = vmatprep.subr.mxu0 0.0
        %535 = vmatpush1.msra.mxu0 0.0
        %536 = vmatprep.subr.mxu0 0.0
        %537 = vmatpush1.msra.mxu0 0.0
        %538 = vmatprep.subr.mxu0 0.0
        %539 = vmatpush1.msra.mxu0 0.0
        %540 = vmatprep.subr.mxu0 0.0
        %541 = vmatpush1.msra.mxu0 0.0
        %542 = vmatprep.subr.mxu0 0.0
        %543 = vmatpush1.msra.mxu0 0.0
        %544 = vmatprep.subr.mxu0 0.0
        %545 = vmatpush1.msra.mxu0 0.0
        %546 = vmatprep.subr.mxu0 0.0
        %547 = vmatpush1.msra.mxu0 0.0
        %548 = vmatprep.subr.mxu0 0.0
        %549 = vmatpush1.msra.mxu0 0.0
        %550 = vmatprep.subr.mxu0 0.0
        %551 = vmatpush1.msra.mxu0 0.0
        %552 = vmatprep.mubr.f32.mxu0 0.0
        %553 = vmatmul.mubr.f32.gmra.mrb[0].mxu0 %v441
        %v554 = vpop.f32.mrb[0].mxu0
        %v555 = vadd.f32 0.0, %v554
        %v556 = vpop.f32.mrb[0].mxu0
        %557 = vmatprep.mubr.f32.mxu0 0.0
        %558 = vmatmul.mubr.f32.gmra.mrb[0].mxu0 %v444
        %v559 = vpop.f32.mrb[0].mxu0
        %v560 = vadd.f32 0.0, %v559
        %v561 = vpop.f32.mrb[0].mxu0
        %562 = vmatprep.mubr.f32.mxu0 0.0
        %563 = vmatmul.mubr.f32.gmra.mrb[0].mxu0 %v447
        %v564 = vpop.f32.mrb[0].mxu0
        %v565 = vadd.f32 0.0, %v564
        %v566 = vpop.f32.mrb[0].mxu0
        %567 = vmatprep.mubr.f32.mxu0 0.0
        %568 = vmatmul.mubr.f32.gmra.mrb[0].mxu0 %v450
        %v569 = vpop.f32.mrb[0].mxu0
        %v570 = vadd.f32 0.0, %v569
        %v571 = vpop.f32.mrb[0].mxu0
        %572 = vmatprep.mubr.f32.mxu0 0.0
        %573 = vmatmul.mubr.f32.gmra.mrb[0].mxu0 %v453
        %v574 = vpop.f32.mrb[0].mxu0
        %v575 = vadd.f32 0.0, %v574
        %v576 = vpop.f32.mrb[0].mxu0
        %577 = vmatprep.mubr.f32.mxu0 0.0
        %578 = vmatmul.mubr.f32.gmra.mrb[0].mxu0 %v456
        %v579 = vpop.f32.mrb[0].mxu0
        %v580 = vadd.f32 0.0, %v579
        %v581 = vpop.f32.mrb[0].mxu0
        %582 = vmatprep.mubr.f32.mxu0 0.0
        %583 = vmatmul.mubr.f32.gmra.mrb[0].mxu0 %v459
        %v584 = vpop.f32.mrb[0].mxu0
        %v585 = vadd.f32 0.0, %v584
        %v586 = vpop.f32.mrb[0].mxu0
        %587 = vmatprep.mubr.f32.mxu0 0.0
        %588 = vmatmul.mubr.f32.gmra.mrb[0].mxu0 %v462
        %v589 = vpop.f32.mrb[0].mxu0
        %v590 = vadd.f32 0.0, %v589
        %v591 = vpop.f32.mrb[0].mxu0
        %592 = vmatprep.mubr.f32.mxu0 0.0
        %593 = vmatmul.mubr.f32.gmra.mrb[0].mxu0 %v465
        %v594 = vpop.f32.mrb[0].mxu0
        %v595 = vadd.f32 0.0, %v594
        %v596 = vpop.f32.mrb[0].mxu0
        %597 = vmatprep.mubr.f32.mxu0 0.0
        %598 = vmatmul.mubr.f32.gmra.mrb[0].mxu0 %v468
        %v599 = vpop.f32.mrb[0].mxu0
        %v600 = vadd.f32 0.0, %v599
        %v601 = vpop.f32.mrb[0].mxu0
        %602 = vmatprep.mubr.f32.mxu0 0.0
        %603 = vmatmul.mubr.f32.gmra.mrb[0].mxu0 %v471
        %v604 = vpop.f32.mrb[0].mxu0
        %v605 = vadd.f32 0.0, %v604
        %v606 = vpop.f32.mrb[0].mxu0
        %607 = vmatprep.mubr.f32.mxu0 0.0
        %608 = vmatmul.mubr.f32.gmra.mrb[0].mxu0 %v474
        %v609 = vpop.f32.mrb[0].mxu0
        %v610 = vadd.f32 0.0, %v609
        %v611 = vpop.f32.mrb[0].mxu0
        %612 = vmatprep.mubr.f32.mxu0 0.0
        %613 = vmatmul.mubr.f32.gmra.mrb[0].mxu0 %v477
        %v614 = vpop.f32.mrb[0].mxu0
        %v615 = vadd.f32 0.0, %v614
        %v616 = vpop.f32.mrb[0].mxu0
        %617 = vmatprep.mubr.f32.mxu0 0.0
        %618 = vmatmul.mubr.f32.gmra.mrb[0].mxu0 %v480
        %v619 = vpop.f32.mrb[0].mxu0
        %v620 = vadd.f32 0.0, %v619
        %v621 = vpop.f32.mrb[0].mxu0
        %622 = vmatprep.mubr.f32.mxu0 0.0
        %623 = vmatmul.mubr.f32.gmra.mrb[0].mxu0 %v483
        %v624 = vpop.f32.mrb[0].mxu0
        %v625 = vadd.f32 0.0, %v624
        %v626 = vpop.f32.mrb[0].mxu0
        %627 = vmatprep.mubr.f32.mxu0 0.0
        %628 = vmatmul.mubr.f32.gmra.mrb[0].mxu0 %v486
        %v629 = vpop.f32.mrb[0].mxu0
        %v630 = vadd.f32 0.0, %v629
        %v631 = vpop.f32.mrb[0].mxu0
        %632 = vdwg.mxu0
        %v633 = vld [vmem:[%s373] sm:$0xff]
        %v634 = vld [vmem:[%s373 + $0x8] sm:$0xff]
        %v635 = vld [vmem:[%s373 + $0x10] sm:$0xff]
        %v636 = vld [vmem:[%s373 + $0x18] sm:$0xff]
        %637 = vmatprep.subr.mxu0 0.0
        %638 = vmatpush1.msra.mxu0 %v633
        %639 = vmatprep.subr.mxu0 0.0
        %640 = vmatpush1.msra.mxu0 %v634
        %641 = vmatprep.subr.mxu0 0.0
        %642 = vmatpush1.msra.mxu0 %v635
        %643 = vmatprep.subr.mxu0 0.0
        %644 = vmatpush1.msra.mxu0 %v636
        %645 = vmatprep.subr.mxu0 0.0
        %646 = vmatpush1.msra.mxu0 0.0
        %647 = vmatprep.subr.mxu0 0.0
        %648 = vmatpush1.msra.mxu0 0.0
        %649 = vmatprep.subr.mxu0 0.0
        %650 = vmatpush1.msra.mxu0 0.0
        %651 = vmatprep.subr.mxu0 0.0
        %652 = vmatpush1.msra.mxu0 0.0
        %653 = vmatprep.subr.mxu0 0.0
        %654 = vmatpush1.msra.mxu0 0.0
        %655 = vmatprep.subr.mxu0 0.0
        %656 = vmatpush1.msra.mxu0 0.0
        %657 = vmatprep.subr.mxu0 0.0
        %658 = vmatpush1.msra.mxu0 0.0
        %659 = vmatprep.subr.mxu0 0.0
        %660 = vmatpush1.msra.mxu0 0.0
        %661 = vmatprep.subr.mxu0 0.0
        %662 = vmatpush1.msra.mxu0 0.0
        %663 = vmatprep.subr.mxu0 0.0
        %664 = vmatpush1.msra.mxu0 0.0
        %665 = vmatprep.subr.mxu0 0.0
        %666 = vmatpush1.msra.mxu0 0.0
        %667 = vmatprep.subr.mxu0 0.0
        %668 = vmatpush1.msra.mxu0 0.0
        %669 = vmatprep.subr.mxu0 0.0
        %670 = vmatpush1.msra.mxu0 0.0
        %671 = vmatprep.subr.mxu0 0.0
        %672 = vmatpush1.msra.mxu0 0.0
        %673 = vmatprep.subr.mxu0 0.0
        %674 = vmatpush1.msra.mxu0 0.0
        %675 = vmatprep.subr.mxu0 0.0
        %676 = vmatpush1.msra.mxu0 0.0
        %677 = vmatprep.subr.mxu0 0.0
        %678 = vmatpush1.msra.mxu0 0.0
        %679 = vmatprep.subr.mxu0 0.0
        %680 = vmatpush1.msra.mxu0 0.0
        %681 = vmatprep.subr.mxu0 0.0
        %682 = vmatpush1.msra.mxu0 0.0
        %683 = vmatprep.subr.mxu0 0.0
        %684 = vmatpush1.msra.mxu0 0.0
        %685 = vmatprep.subr.mxu0 0.0
        %686 = vmatpush1.msra.mxu0 0.0
        %687 = vmatprep.subr.mxu0 0.0
        %688 = vmatpush1.msra.mxu0 0.0
        %689 = vmatprep.subr.mxu0 0.0
        %690 = vmatpush1.msra.mxu0 0.0
        %691 = vmatprep.subr.mxu0 0.0
        %692 = vmatpush1.msra.mxu0 0.0
        %693 = vmatprep.subr.mxu0 0.0
        %694 = vmatpush1.msra.mxu0 0.0
        %695 = vmatprep.subr.mxu0 0.0
        %696 = vmatpush1.msra.mxu0 0.0
        %697 = vmatprep.subr.mxu0 0.0
        %698 = vmatpush1.msra.mxu0 0.0
        %699 = vmatprep.subr.mxu0 0.0
        %700 = vmatpush1.msra.mxu0 0.0
        %701 = vmatprep.mubr.f32.mxu0 0.0
        %702 = vmatmul.mubr.f32.gmra.mrb[0].mxu0 %v441
        %v703 = vpop.f32.mrb[0].mxu0
        %v704 = vadd.f32 0.0, %v703
        %v705 = vpop.f32.mrb[0].mxu0
        %706 = vmatprep.mubr.f32.mxu0 0.0
        %707 = vmatmul.mubr.f32.gmra.mrb[0].mxu0 %v444
        %v708 = vpop.f32.mrb[0].mxu0
        %v709 = vadd.f32 0.0, %v708
        %v710 = vpop.f32.mrb[0].mxu0
        %711 = vmatprep.mubr.f32.mxu0 0.0
        %712 = vmatmul.mubr.f32.gmra.mrb[0].mxu0 %v447
        %v713 = vpop.f32.mrb[0].mxu0
        %v714 = vadd.f32 0.0, %v713
        %v715 = vpop.f32.mrb[0].mxu0
        %716 = vmatprep.mubr.f32.mxu0 0.0
        %717 = vmatmul.mubr.f32.gmra.mrb[0].mxu0 %v450
        %v718 = vpop.f32.mrb[0].mxu0
        %v719 = vadd.f32 0.0, %v718
        %v720 = vpop.f32.mrb[0].mxu0
        %721 = vmatprep.mubr.f32.mxu0 0.0
        %722 = vmatmul.mubr.f32.gmra.mrb[0].mxu0 %v453
        %v723 = vpop.f32.mrb[0].mxu0
        %v724 = vadd.f32 0.0, %v723
        %v725 = vpop.f32.mrb[0].mxu0
        %726 = vmatprep.mubr.f32.mxu0 0.0
        %727 = vmatmul.mubr.f32.gmra.mrb[0].mxu0 %v456
        %v728 = vpop.f32.mrb[0].mxu0
        %v729 = vadd.f32 0.0, %v728
        %v730 = vpop.f32.mrb[0].mxu0
        %731 = vmatprep.mubr.f32.mxu0 0.0
        %732 = vmatmul.mubr.f32.gmra.mrb[0].mxu0 %v459
        %v733 = vpop.f32.mrb[0].mxu0
        %v734 = vadd.f32 0.0, %v733
        %v735 = vpop.f32.mrb[0].mxu0
        %736 = vmatprep.mubr.f32.mxu0 0.0
        %737 = vmatmul.mubr.f32.gmra.mrb[0].mxu0 %v462
        %v738 = vpop.f32.mrb[0].mxu0
        %v739 = vadd.f32 0.0, %v738
        %v740 = vpop.f32.mrb[0].mxu0
        %741 = vmatprep.mubr.f32.mxu0 0.0
        %742 = vmatmul.mubr.f32.gmra.mrb[0].mxu0 %v465
        %v743 = vpop.f32.mrb[0].mxu0
        %v744 = vadd.f32 0.0, %v743
        %v745 = vpop.f32.mrb[0].mxu0
        %746 = vmatprep.mubr.f32.mxu0 0.0
        %747 = vmatmul.mubr.f32.gmra.mrb[0].mxu0 %v468
        %v748 = vpop.f32.mrb[0].mxu0
        %v749 = vadd.f32 0.0, %v748
        %v750 = vpop.f32.mrb[0].mxu0
        %751 = vmatprep.mubr.f32.mxu0 0.0
        %752 = vmatmul.mubr.f32.gmra.mrb[0].mxu0 %v471
        %v753 = vpop.f32.mrb[0].mxu0
        %v754 = vadd.f32 0.0, %v753
        %v755 = vpop.f32.mrb[0].mxu0
        %756 = vmatprep.mubr.f32.mxu0 0.0
        %757 = vmatmul.mubr.f32.gmra.mrb[0].mxu0 %v474
        %v758 = vpop.f32.mrb[0].mxu0
        %v759 = vadd.f32 0.0, %v758
        %v760 = vpop.f32.mrb[0].mxu0
        %761 = vmatprep.mubr.f32.mxu0 0.0
        %762 = vmatmul.mubr.f32.gmra.mrb[0].mxu0 %v477
        %v763 = vpop.f32.mrb[0].mxu0
        %v764 = vadd.f32 0.0, %v763
        %v765 = vpop.f32.mrb[0].mxu0
        %766 = vmatprep.mubr.f32.mxu0 0.0
        %767 = vmatmul.mubr.f32.gmra.mrb[0].mxu0 %v480
        %v768 = vpop.f32.mrb[0].mxu0
        %v769 = vadd.f32 0.0, %v768
        %v770 = vpop.f32.mrb[0].mxu0
        %771 = vmatprep.mubr.f32.mxu0 0.0
        %772 = vmatmul.mubr.f32.gmra.mrb[0].mxu0 %v483
        %v773 = vpop.f32.mrb[0].mxu0
        %v774 = vadd.f32 0.0, %v773
        %v775 = vpop.f32.mrb[0].mxu0
        %776 = vmatprep.mubr.f32.mxu0 0.0
        %777 = vmatmul.mubr.f32.gmra.mrb[0].mxu0 %v486
        %v778 = vpop.f32.mrb[0].mxu0
        %v779 = vadd.f32 0.0, %v778
        %v780 = vpop.f32.mrb[0].mxu0
        %781 = vdwg.mxu0
        %v782 = vxor.u32 %v555, 2147483648
        %v783 = vxor.u32 %v560, 2147483648
        %v784 = vxor.u32 %v565, 2147483648
        %v785 = vxor.u32 %v570, 2147483648
        %v786 = vxor.u32 %v575, 2147483648
        %v787 = vxor.u32 %v580, 2147483648
        %v788 = vxor.u32 %v585, 2147483648
        %v789 = vxor.u32 %v590, 2147483648
        %v790 = vxor.u32 %v595, 2147483648
        %v791 = vxor.u32 %v600, 2147483648
        %v792 = vxor.u32 %v605, 2147483648
        %v793 = vxor.u32 %v610, 2147483648
        %v794 = vxor.u32 %v615, 2147483648
        %v795 = vxor.u32 %v620, 2147483648
        %v796 = vxor.u32 %v625, 2147483648
        %v797 = vxor.u32 %v630, 2147483648
        %v798 = vmul.f32 %v782, 1.442695
        %v799 = vpow.pop %v798
        %v800 = vmul.f32 %v783, 1.442695
        %v801 = vpow.pop %v800
        %v802 = vmul.f32 %v784, 1.442695
        %v803 = vpow.pop %v802
        %v804 = vmul.f32 %v785, 1.442695
        %v805 = vpow.pop %v804
        %v806 = vmul.f32 %v786, 1.442695
        %v807 = vpow.pop %v806
        %v808 = vmul.f32 %v787, 1.442695
        %v809 = vpow.pop %v808
        %v810 = vmul.f32 %v788, 1.442695
        %v811 = vpow.pop %v810
        %v812 = vmul.f32 %v789, 1.442695
        %v813 = vpow.pop %v812
        %v814 = vmul.f32 %v790, 1.442695
        %v815 = vpow.pop %v814
        %v816 = vmul.f32 %v791, 1.442695
        %v817 = vpow.pop %v816
        %v818 = vmul.f32 %v792, 1.442695
        %v819 = vpow.pop %v818
        %v820 = vmul.f32 %v793, 1.442695
        %v821 = vpow.pop %v820
        %v822 = vmul.f32 %v794, 1.442695
        %v823 = vpow.pop %v822
        %v824 = vmul.f32 %v795, 1.442695
        %v825 = vpow.pop %v824
        %v826 = vmul.f32 %v796, 1.442695
        %v827 = vpow.pop %v826
        %v828 = vmul.f32 %v797, 1.442695
        %v829 = vpow.pop %v828
        %v830 = vadd.f32 %v799, 1.0
        %v831 = vadd.f32 %v801, 1.0
        %v832 = vadd.f32 %v803, 1.0
        %v833 = vadd.f32 %v805, 1.0
        %v834 = vadd.f32 %v807, 1.0
        %v835 = vadd.f32 %v809, 1.0
        %v836 = vadd.f32 %v811, 1.0
        %v837 = vadd.f32 %v813, 1.0
        %v838 = vadd.f32 %v815, 1.0
        %v839 = vadd.f32 %v817, 1.0
        %v840 = vadd.f32 %v819, 1.0
        %v841 = vadd.f32 %v821, 1.0
        %v842 = vadd.f32 %v823, 1.0
        %v843 = vadd.f32 %v825, 1.0
        %v844 = vadd.f32 %v827, 1.0
        %v845 = vadd.f32 %v829, 1.0
        %v846 = vrcp.pop %v830
        %v847 = vmul.f32 1.0, %v846
        %v848 = vrcp.pop %v831
        %v849 = vmul.f32 1.0, %v848
        %v850 = vrcp.pop %v832
        %v851 = vmul.f32 1.0, %v850
        %v852 = vrcp.pop %v833
        %v853 = vmul.f32 1.0, %v852
        %v854 = vrcp.pop %v834
        %v855 = vmul.f32 1.0, %v854
        %v856 = vrcp.pop %v835
        %v857 = vmul.f32 1.0, %v856
        %v858 = vrcp.pop %v836
        %v859 = vmul.f32 1.0, %v858
        %v860 = vrcp.pop %v837
        %v861 = vmul.f32 1.0, %v860
        %v862 = vrcp.pop %v838
        %v863 = vmul.f32 1.0, %v862
        %v864 = vrcp.pop %v839
        %v865 = vmul.f32 1.0, %v864
        %v866 = vrcp.pop %v840
        %v867 = vmul.f32 1.0, %v866
        %v868 = vrcp.pop %v841
        %v869 = vmul.f32 1.0, %v868
        %v870 = vrcp.pop %v842
        %v871 = vmul.f32 1.0, %v870
        %v872 = vrcp.pop %v843
        %v873 = vmul.f32 1.0, %v872
        %v874 = vrcp.pop %v844
        %v875 = vmul.f32 1.0, %v874
        %v876 = vrcp.pop %v845
        %v877 = vmul.f32 1.0, %v876
        %v878 = vmul.f32 %v555, %v847
        %v879 = vmul.f32 %v560, %v849
        %v880 = vmul.f32 %v565, %v851
        %v881 = vmul.f32 %v570, %v853
        %v882 = vmul.f32 %v575, %v855
        %v883 = vmul.f32 %v580, %v857
        %v884 = vmul.f32 %v585, %v859
        %v885 = vmul.f32 %v590, %v861
        %v886 = vmul.f32 %v595, %v863
        %v887 = vmul.f32 %v600, %v865
        %v888 = vmul.f32 %v605, %v867
        %v889 = vmul.f32 %v610, %v869
        %v890 = vmul.f32 %v615, %v871
        %v891 = vmul.f32 %v620, %v873
        %v892 = vmul.f32 %v625, %v875
        %v893 = vmul.f32 %v630, %v877
        %v894 = vmul.f32 %v878, %v704
        %v895 = vmul.f32 %v879, %v709
        %v896 = vmul.f32 %v880, %v714
        %v897 = vmul.f32 %v881, %v719
        %v898 = vmul.f32 %v882, %v724
        %v899 = vmul.f32 %v883, %v729
        %v900 = vmul.f32 %v884, %v734
        %v901 = vmul.f32 %v885, %v739
        %v902 = vmul.f32 %v886, %v744
        %v903 = vmul.f32 %v887, %v749
        %v904 = vmul.f32 %v888, %v754
        %v905 = vmul.f32 %v889, %v759
        %v906 = vmul.f32 %v890, %v764
        %v907 = vmul.f32 %v891, %v769
        %v908 = vmul.f32 %v892, %v774
        %v909 = vmul.f32 %v893, %v779
        %v910 = vld [vmem:[%s353] sm:$0xff]
        %v911 = vld [vmem:[%s353 + $0x8] sm:$0xff]
        %v912 = vld [vmem:[%s353 + $0x10] sm:$0xff]
        %v913 = vld [vmem:[%s353 + $0x18] sm:$0xff]
        %v914 = vld [vmem:[%s353 + $0x20] sm:$0xff]
        %v915 = vld [vmem:[%s353 + $0x28] sm:$0xff]
        %v916 = vld [vmem:[%s353 + $0x30] sm:$0xff]
        %v917 = vld [vmem:[%s353 + $0x38] sm:$0xff]
        %v918 = vld [vmem:[%s353 + $0x40] sm:$0xff]
        %v919 = vld [vmem:[%s353 + $0x48] sm:$0xff]
        %v920 = vld [vmem:[%s353 + $0x50] sm:$0xff]
        %v921 = vld [vmem:[%s353 + $0x58] sm:$0xff]
        %v922 = vld [vmem:[%s353 + $0x60] sm:$0xff]
        %v923 = vld [vmem:[%s353 + $0x68] sm:$0xff]
        %v924 = vld [vmem:[%s353 + $0x70] sm:$0xff]
        %v925 = vld [vmem:[%s353 + $0x78] sm:$0xff]
        %927 = vset.pattern.permute.xlu0 0
        %928 = vperm.xlu0 %927, %v910
        %v929 = vpop.permute.xlu0 %928
        %932 = vset.pattern.permute.xlu0 0
        %933 = vperm.xlu0 %932, %v911
        %v934 = vpop.permute.xlu0 %933
        %937 = vset.pattern.permute.xlu0 0
        %938 = vperm.xlu0 %937, %v912
        %v939 = vpop.permute.xlu0 %938
        %942 = vset.pattern.permute.xlu0 0
        %943 = vperm.xlu0 %942, %v913
        %v944 = vpop.permute.xlu0 %943
        %947 = vset.pattern.permute.xlu0 0
        %948 = vperm.xlu0 %947, %v914
        %v949 = vpop.permute.xlu0 %948
        %952 = vset.pattern.permute.xlu0 0
        %953 = vperm.xlu0 %952, %v915
        %v954 = vpop.permute.xlu0 %953
        %957 = vset.pattern.permute.xlu0 0
        %958 = vperm.xlu0 %957, %v916
        %v959 = vpop.permute.xlu0 %958
        %962 = vset.pattern.permute.xlu0 0
        %963 = vperm.xlu0 %962, %v917
        %v964 = vpop.permute.xlu0 %963
        %967 = vset.pattern.permute.xlu0 0
        %968 = vperm.xlu0 %967, %v918
        %v969 = vpop.permute.xlu0 %968
        %972 = vset.pattern.permute.xlu0 0
        %973 = vperm.xlu0 %972, %v919
        %v974 = vpop.permute.xlu0 %973
        %977 = vset.pattern.permute.xlu0 0
        %978 = vperm.xlu0 %977, %v920
        %v979 = vpop.permute.xlu0 %978
        %982 = vset.pattern.permute.xlu0 0
        %983 = vperm.xlu0 %982, %v921
        %v984 = vpop.permute.xlu0 %983
        %987 = vset.pattern.permute.xlu0 0
        %988 = vperm.xlu0 %987, %v922
        %v989 = vpop.permute.xlu0 %988
        %992 = vset.pattern.permute.xlu0 0
        %993 = vperm.xlu0 %992, %v923
        %v994 = vpop.permute.xlu0 %993
        %997 = vset.pattern.permute.xlu0 0
        %998 = vperm.xlu0 %997, %v924
        %v999 = vpop.permute.xlu0 %998
        %1002 = vset.pattern.permute.xlu0 0
        %1003 = vperm.xlu0 %1002, %v925
        %v1004 = vpop.permute.xlu0 %1003
        %v1006 = vmul.f32 %v894, %v929
        %v1007 = vmul.f32 %v895, %v934
        %v1008 = vmul.f32 %v896, %v939
        %v1009 = vmul.f32 %v897, %v944
        %v1010 = vmul.f32 %v898, %v949
        %v1011 = vmul.f32 %v899, %v954
        %v1012 = vmul.f32 %v900, %v959
        %v1013 = vmul.f32 %v901, %v964
        %v1014 = vmul.f32 %v902, %v969
        %v1015 = vmul.f32 %v903, %v974
        %v1016 = vmul.f32 %v904, %v979
        %v1017 = vmul.f32 %v905, %v984
        %v1018 = vmul.f32 %v906, %v989
        %v1019 = vmul.f32 %v907, %v994
        %v1020 = vmul.f32 %v908, %v999
        %v1021 = vmul.f32 %v909, %v1004
        %v1022 = vld [vmem:[#allocation2] sm:$0xff]
        %v1023 = vld [vmem:[#allocation2 + $0x8] sm:$0xff]
        %v1024 = vld [vmem:[#allocation2 + $0x10] sm:$0xff]
        %v1025 = vld [vmem:[#allocation2 + $0x18] sm:$0xff]
        %v1026 = vld [vmem:[#allocation2 + $0x20] sm:$0xff]
        %v1027 = vld [vmem:[#allocation2 + $0x28] sm:$0xff]
        %v1028 = vld [vmem:[#allocation2 + $0x30] sm:$0xff]
        %v1029 = vld [vmem:[#allocation2 + $0x38] sm:$0xff]
        %v1030 = vld [vmem:[#allocation2 + $0x40] sm:$0xff]
        %v1031 = vld [vmem:[#allocation2 + $0x48] sm:$0xff]
        %v1032 = vld [vmem:[#allocation2 + $0x50] sm:$0xff]
        %v1033 = vld [vmem:[#allocation2 + $0x58] sm:$0xff]
        %v1034 = vld [vmem:[#allocation2 + $0x60] sm:$0xff]
        %v1035 = vld [vmem:[#allocation2 + $0x68] sm:$0xff]
        %v1036 = vld [vmem:[#allocation2 + $0x70] sm:$0xff]
        %v1037 = vld [vmem:[#allocation2 + $0x78] sm:$0xff]
        %v1038 = vld [vmem:[%s384] sm:$0xff]
        %v1039 = vld [vmem:[%s384 + $0x8] sm:$0xff]
        %vm1040 = vcmask 130048
        %v1042 = vsel %vm1040, %v1006, 0
        %v1045 = vsel %vm1040, %v1007, 0
        %v1048 = vsel %vm1040, %v1008, 0
        %v1051 = vsel %vm1040, %v1009, 0
        %v1054 = vsel %vm1040, %v1010, 0
        %v1057 = vsel %vm1040, %v1011, 0
        %v1060 = vsel %vm1040, %v1012, 0
        %v1063 = vsel %vm1040, %v1013, 0
        %v1066 = vsel %vm1040, %v1014, 0
        %v1069 = vsel %vm1040, %v1015, 0
        %v1072 = vsel %vm1040, %v1016, 0
        %v1075 = vsel %vm1040, %v1017, 0
        %v1078 = vsel %vm1040, %v1018, 0
        %v1081 = vsel %vm1040, %v1019, 0
        %v1084 = vsel %vm1040, %v1020, 0
        %v1087 = vsel %vm1040, %v1021, 0
        %1089 = vmatprep.subr.mxu0 0.0
        %1090 = vmatpush1.msra.mxu0 %v1038
        %1091 = vmatprep.subr.mxu0 0.0
        %1092 = vmatpush1.msra.mxu0 %v1039
        %1093 = vmatprep.subr.mxu0 0.0
        %1094 = vmatpush1.msra.mxu0 0.0
        %1095 = vmatprep.subr.mxu0 0.0
        %1096 = vmatpush1.msra.mxu0 0.0
        %1097 = vmatprep.subr.mxu0 0.0
        %1098 = vmatpush1.msra.mxu0 0.0
        %1099 = vmatprep.subr.mxu0 0.0
        %1100 = vmatpush1.msra.mxu0 0.0
        %1101 = vmatprep.subr.mxu0 0.0
        %1102 = vmatpush1.msra.mxu0 0.0
        %1103 = vmatprep.subr.mxu0 0.0
        %1104 = vmatpush1.msra.mxu0 0.0
        %1105 = vmatprep.subr.mxu0 0.0
        %1106 = vmatpush1.msra.mxu0 0.0
        %1107 = vmatprep.subr.mxu0 0.0
        %1108 = vmatpush1.msra.mxu0 0.0
        %1109 = vmatprep.subr.mxu0 0.0
        %1110 = vmatpush1.msra.mxu0 0.0
        %1111 = vmatprep.subr.mxu0 0.0
        %1112 = vmatpush1.msra.mxu0 0.0
        %1113 = vmatprep.subr.mxu0 0.0
        %1114 = vmatpush1.msra.mxu0 0.0
        %1115 = vmatprep.subr.mxu0 0.0
        %1116 = vmatpush1.msra.mxu0 0.0
        %1117 = vmatprep.subr.mxu0 0.0
        %1118 = vmatpush1.msra.mxu0 0.0
        %1119 = vmatprep.subr.mxu0 0.0
        %1120 = vmatpush1.msra.mxu0 0.0
        %1121 = vmatprep.subr.mxu0 0.0
        %1122 = vmatpush1.msra.mxu0 0.0
        %1123 = vmatprep.subr.mxu0 0.0
        %1124 = vmatpush1.msra.mxu0 0.0
        %1125 = vmatprep.subr.mxu0 0.0
        %1126 = vmatpush1.msra.mxu0 0.0
        %1127 = vmatprep.subr.mxu0 0.0
        %1128 = vmatpush1.msra.mxu0 0.0
        %1129 = vmatprep.subr.mxu0 0.0
        %1130 = vmatpush1.msra.mxu0 0.0
        %1131 = vmatprep.subr.mxu0 0.0
        %1132 = vmatpush1.msra.mxu0 0.0
        %1133 = vmatprep.subr.mxu0 0.0
        %1134 = vmatpush1.msra.mxu0 0.0
        %1135 = vmatprep.subr.mxu0 0.0
        %1136 = vmatpush1.msra.mxu0 0.0
        %1137 = vmatprep.subr.mxu0 0.0
        %1138 = vmatpush1.msra.mxu0 0.0
        %1139 = vmatprep.subr.mxu0 0.0
        %1140 = vmatpush1.msra.mxu0 0.0
        %1141 = vmatprep.subr.mxu0 0.0
        %1142 = vmatpush1.msra.mxu0 0.0
        %1143 = vmatprep.subr.mxu0 0.0
        %1144 = vmatpush1.msra.mxu0 0.0
        %1145 = vmatprep.subr.mxu0 0.0
        %1146 = vmatpush1.msra.mxu0 0.0
        %1147 = vmatprep.subr.mxu0 0.0
        %1148 = vmatpush1.msra.mxu0 0.0
        %1149 = vmatprep.subr.mxu0 0.0
        %1150 = vmatpush1.msra.mxu0 0.0
        %1151 = vmatprep.subr.mxu0 0.0
        %1152 = vmatpush1.msra.mxu0 0.0
        %1153 = vmatprep.mubr.f32.mxu0 0.0
        %1154 = vmatmul.mubr.f32.gmra.mrb[0].mxu0 %v1042
        %v1155 = vpop.f32.mrb[0].mxu0
        %v1156 = vadd.f32 0.0, %v1155
        %v1157 = vpop.f32.mrb[0].mxu0
        %1158 = vmatprep.mubr.f32.mxu0 0.0
        %1159 = vmatmul.mubr.f32.gmra.mrb[0].mxu0 %v1045
        %v1160 = vpop.f32.mrb[0].mxu0
        %v1161 = vadd.f32 0.0, %v1160
        %v1162 = vpop.f32.mrb[0].mxu0
        %1163 = vmatprep.mubr.f32.mxu0 0.0
        %1164 = vmatmul.mubr.f32.gmra.mrb[0].mxu0 %v1048
        %v1165 = vpop.f32.mrb[0].mxu0
        %v1166 = vadd.f32 0.0, %v1165
        %v1167 = vpop.f32.mrb[0].mxu0
        %1168 = vmatprep.mubr.f32.mxu0 0.0
        %1169 = vmatmul.mubr.f32.gmra.mrb[0].mxu0 %v1051
        %v1170 = vpop.f32.mrb[0].mxu0
        %v1171 = vadd.f32 0.0, %v1170
        %v1172 = vpop.f32.mrb[0].mxu0
        %1173 = vmatprep.mubr.f32.mxu0 0.0
        %1174 = vmatmul.mubr.f32.gmra.mrb[0].mxu0 %v1054
        %v1175 = vpop.f32.mrb[0].mxu0
        %v1176 = vadd.f32 0.0, %v1175
        %v1177 = vpop.f32.mrb[0].mxu0
        %1178 = vmatprep.mubr.f32.mxu0 0.0
        %1179 = vmatmul.mubr.f32.gmra.mrb[0].mxu0 %v1057
        %v1180 = vpop.f32.mrb[0].mxu0
        %v1181 = vadd.f32 0.0, %v1180
        %v1182 = vpop.f32.mrb[0].mxu0
        %1183 = vmatprep.mubr.f32.mxu0 0.0
        %1184 = vmatmul.mubr.f32.gmra.mrb[0].mxu0 %v1060
        %v1185 = vpop.f32.mrb[0].mxu0
        %v1186 = vadd.f32 0.0, %v1185
        %v1187 = vpop.f32.mrb[0].mxu0
        %1188 = vmatprep.mubr.f32.mxu0 0.0
        %1189 = vmatmul.mubr.f32.gmra.mrb[0].mxu0 %v1063
        %v1190 = vpop.f32.mrb[0].mxu0
        %v1191 = vadd.f32 0.0, %v1190
        %v1192 = vpop.f32.mrb[0].mxu0
        %1193 = vmatprep.mubr.f32.mxu0 0.0
        %1194 = vmatmul.mubr.f32.gmra.mrb[0].mxu0 %v1066
        %v1195 = vpop.f32.mrb[0].mxu0
        %v1196 = vadd.f32 0.0, %v1195
        %v1197 = vpop.f32.mrb[0].mxu0
        %1198 = vmatprep.mubr.f32.mxu0 0.0
        %1199 = vmatmul.mubr.f32.gmra.mrb[0].mxu0 %v1069
        %v1200 = vpop.f32.mrb[0].mxu0
        %v1201 = vadd.f32 0.0, %v1200
        %v1202 = vpop.f32.mrb[0].mxu0
        %1203 = vmatprep.mubr.f32.mxu0 0.0
        %1204 = vmatmul.mubr.f32.gmra.mrb[0].mxu0 %v1072
        %v1205 = vpop.f32.mrb[0].mxu0
        %v1206 = vadd.f32 0.0, %v1205
        %v1207 = vpop.f32.mrb[0].mxu0
        %1208 = vmatprep.mubr.f32.mxu0 0.0
        %1209 = vmatmul.mubr.f32.gmra.mrb[0].mxu0 %v1075
        %v1210 = vpop.f32.mrb[0].mxu0
        %v1211 = vadd.f32 0.0, %v1210
        %v1212 = vpop.f32.mrb[0].mxu0
        %1213 = vmatprep.mubr.f32.mxu0 0.0
        %1214 = vmatmul.mubr.f32.gmra.mrb[0].mxu0 %v1078
        %v1215 = vpop.f32.mrb[0].mxu0
        %v1216 = vadd.f32 0.0, %v1215
        %v1217 = vpop.f32.mrb[0].mxu0
        %1218 = vmatprep.mubr.f32.mxu0 0.0
        %1219 = vmatmul.mubr.f32.gmra.mrb[0].mxu0 %v1081
        %v1220 = vpop.f32.mrb[0].mxu0
        %v1221 = vadd.f32 0.0, %v1220
        %v1222 = vpop.f32.mrb[0].mxu0
        %1223 = vmatprep.mubr.f32.mxu0 0.0
        %1224 = vmatmul.mubr.f32.gmra.mrb[0].mxu0 %v1084
        %v1225 = vpop.f32.mrb[0].mxu0
        %v1226 = vadd.f32 0.0, %v1225
        %v1227 = vpop.f32.mrb[0].mxu0
        %1228 = vmatprep.mubr.f32.mxu0 0.0
        %1229 = vmatmul.mubr.f32.gmra.mrb[0].mxu0 %v1087
        %v1230 = vpop.f32.mrb[0].mxu0
        %v1231 = vadd.f32 0.0, %v1230
        %v1232 = vpop.f32.mrb[0].mxu0
        %1233 = vdwg.mxu0
        %v1234 = vadd.f32 %v1022, %v1156
        %v1235 = vadd.f32 %v1023, %v1161
        %v1236 = vadd.f32 %v1024, %v1166
        %v1237 = vadd.f32 %v1025, %v1171
        %v1238 = vadd.f32 %v1026, %v1176
        %v1239 = vadd.f32 %v1027, %v1181
        %v1240 = vadd.f32 %v1028, %v1186
        %v1241 = vadd.f32 %v1029, %v1191
        %v1242 = vadd.f32 %v1030, %v1196
        %v1243 = vadd.f32 %v1031, %v1201
        %v1244 = vadd.f32 %v1032, %v1206
        %v1245 = vadd.f32 %v1033, %v1211
        %v1246 = vadd.f32 %v1034, %v1216
        %v1247 = vadd.f32 %v1035, %v1221
        %v1248 = vadd.f32 %v1036, %v1226
        %v1249 = vadd.f32 %v1037, %v1231
        %1250 = vst.msk [vmem:[#allocation2] sm:$0xff] %vm439, %v1234
        %1251 = vst.msk [vmem:[#allocation2 + $0x8] sm:$0xff] %vm439, %v1235
        %1252 = vst.msk [vmem:[#allocation2 + $0x10] sm:$0xff] %vm439, %v1236
        %1253 = vst.msk [vmem:[#allocation2 + $0x18] sm:$0xff] %vm439, %v1237
        %1254 = vst.msk [vmem:[#allocation2 + $0x20] sm:$0xff] %vm439, %v1238
        %1255 = vst.msk [vmem:[#allocation2 + $0x28] sm:$0xff] %vm439, %v1239
        %1256 = vst.msk [vmem:[#allocation2 + $0x30] sm:$0xff] %vm439, %v1240
        %1257 = vst.msk [vmem:[#allocation2 + $0x38] sm:$0xff] %vm439, %v1241
        %1258 = vst.msk [vmem:[#allocation2 + $0x40] sm:$0xff] %vm439, %v1242
        %1259 = vst.msk [vmem:[#allocation2 + $0x48] sm:$0xff] %vm439, %v1243
        %1260 = vst.msk [vmem:[#allocation2 + $0x50] sm:$0xff] %vm439, %v1244
        %1261 = vst.msk [vmem:[#allocation2 + $0x58] sm:$0xff] %vm439, %v1245
        %1262 = vst.msk [vmem:[#allocation2 + $0x60] sm:$0xff] %vm439, %v1246
        %1263 = vst.msk [vmem:[#allocation2 + $0x68] sm:$0xff] %vm439, %v1247
        %1264 = vst.msk [vmem:[#allocation2 + $0x70] sm:$0xff] %vm439, %v1248
        %1265 = vst.msk [vmem:[#allocation2 + $0x78] sm:$0xff] %vm439, %v1249
        // Predicated region
        $region49: #{ernie45_moe_block.5} parent=43 // pred_check
          %p1266 = pneg %p398
        $region50: #{ernie45_moe_block.5} parent=43 // pred_check_branch
          %1268 = sbr.rel (%p1266) target = $region52
        $region51: #{ernie45_moe_block.5} parent=43 // pred_region
          %v1269 = vld [vmem:[#allocation2] sm:$0xff]
          %v1270 = vld [vmem:[#allocation2 + $0x8] sm:$0xff]
          %v1271 = vld [vmem:[#allocation2 + $0x10] sm:$0xff]
          %v1272 = vld [vmem:[#allocation2 + $0x18] sm:$0xff]
          %v1273 = vld [vmem:[#allocation2 + $0x20] sm:$0xff]
          %v1274 = vld [vmem:[#allocation2 + $0x28] sm:$0xff]
          %v1275 = vld [vmem:[#allocation2 + $0x30] sm:$0xff]
          %v1276 = vld [vmem:[#allocation2 + $0x38] sm:$0xff]
          %v1277 = vld [vmem:[#allocation2 + $0x40] sm:$0xff]
          %v1278 = vld [vmem:[#allocation2 + $0x48] sm:$0xff]
          %v1279 = vld [vmem:[#allocation2 + $0x50] sm:$0xff]
          %v1280 = vld [vmem:[#allocation2 + $0x58] sm:$0xff]
          %v1281 = vld [vmem:[#allocation2 + $0x60] sm:$0xff]
          %v1282 = vld [vmem:[#allocation2 + $0x68] sm:$0xff]
          %v1283 = vld [vmem:[#allocation2 + $0x70] sm:$0xff]
          %v1284 = vld [vmem:[#allocation2 + $0x78] sm:$0xff]
          %1285 = vst.msk [vmem:[%s391] sm:$0xff] %vm439, %v1269
          %1286 = vst.msk [vmem:[%s391 + $0x8] sm:$0xff] %vm439, %v1270
          %1287 = vst.msk [vmem:[%s391 + $0x10] sm:$0xff] %vm439, %v1271
          %1288 = vst.msk [vmem:[%s391 + $0x18] sm:$0xff] %vm439, %v1272
          %1289 = vst.msk [vmem:[%s391 + $0x20] sm:$0xff] %vm439, %v1273
          %1290 = vst.msk [vmem:[%s391 + $0x28] sm:$0xff] %vm439, %v1274
          %1291 = vst.msk [vmem:[%s391 + $0x30] sm:$0xff] %vm439, %v1275
          %1292 = vst.msk [vmem:[%s391 + $0x38] sm:$0xff] %vm439, %v1276
          %1293 = vst.msk [vmem:[%s391 + $0x40] sm:$0xff] %vm439, %v1277
          %1294 = vst.msk [vmem:[%s391 + $0x48] sm:$0xff] %vm439, %v1278
          %1295 = vst.msk [vmem:[%s391 + $0x50] sm:$0xff] %vm439, %v1279
          %1296 = vst.msk [vmem:[%s391 + $0x58] sm:$0xff] %vm439, %v1280
          %1297 = vst.msk [vmem:[%s391 + $0x60] sm:$0xff] %vm439, %v1281
          %1298 = vst.msk [vmem:[%s391 + $0x68] sm:$0xff] %vm439, %v1282
          %1299 = vst.msk [vmem:[%s391 + $0x70] sm:$0xff] %vm439, %v1283
          %1300 = vst.msk [vmem:[%s391 + $0x78] sm:$0xff] %vm439, %v1284
        $region52: #{ernie45_moe_block.5} parent=43 // pred_fallthru
          _
      $region44: #{ernie45_moe_block.5} parent=39 // pred_fallthru
        _
      %p1301 = scmp.eq.s32.totalorder %s393, 0
      %p1302 = scmp.eq.s32.totalorder %s33, 0
      %p1303 = pnand %p1301, %p1302
      %p1304 = pneg %p1303
      // Predicated region
      $region53: #{ernie45_moe_block.5} parent=39 // pred_check
        _
      $region54: #{ernie45_moe_block.5} parent=39 // pred_check_branch
        %1306 = sbr.rel (%p1303) target = $region56
      $region55: #{ernie45_moe_block.5} parent=39 // pred_region
        %vm1307 = vcmask 261120
        %1308 = vst.msk [vmem:[%s391] sm:$0xff] %vm1307, 0.0
        %1309 = vst.msk [vmem:[%s391 + $0x8] sm:$0xff] %vm1307, 0.0
        %1310 = vst.msk [vmem:[%s391 + $0x10] sm:$0xff] %vm1307, 0.0
        %1311 = vst.msk [vmem:[%s391 + $0x18] sm:$0xff] %vm1307, 0.0
        %1312 = vst.msk [vmem:[%s391 + $0x20] sm:$0xff] %vm1307, 0.0
        %1313 = vst.msk [vmem:[%s391 + $0x28] sm:$0xff] %vm1307, 0.0
        %1314 = vst.msk [vmem:[%s391 + $0x30] sm:$0xff] %vm1307, 0.0
        %1315 = vst.msk [vmem:[%s391 + $0x38] sm:$0xff] %vm1307, 0.0
        %1316 = vst.msk [vmem:[%s391 + $0x40] sm:$0xff] %vm1307, 0.0
        %1317 = vst.msk [vmem:[%s391 + $0x48] sm:$0xff] %vm1307, 0.0
        %1318 = vst.msk [vmem:[%s391 + $0x50] sm:$0xff] %vm1307, 0.0
        %1319 = vst.msk [vmem:[%s391 + $0x58] sm:$0xff] %vm1307, 0.0
        %1320 = vst.msk [vmem:[%s391 + $0x60] sm:$0xff] %vm1307, 0.0
        %1321 = vst.msk [vmem:[%s391 + $0x68] sm:$0xff] %vm1307, 0.0
        %1322 = vst.msk [vmem:[%s391 + $0x70] sm:$0xff] %vm1307, 0.0
        %1323 = vst.msk [vmem:[%s391 + $0x78] sm:$0xff] %vm1307, 0.0
      $region56: #{ernie45_moe_block.5} parent=39 // pred_fallthru
        _
      %s1324 = smul.u32 16, %s32
      %p1325 = scmp.lt.s32.totalorder %s1324, 143
      %s1326 = scalar_select %p1325, %s1324, 143
      %s1327 = smul.addr %s1326, 8
      %s1328 = scalar_lea.vmem %s7, %s1327
      // Predicated region
      $region57: #{ernie45_moe_block.5} parent=39 // pred_check
        %p1329 = pneg %p200
      $region58: #{ernie45_moe_block.5} parent=39 // pred_check_branch
        %1331 = sbr.rel (%p1329) target = $region60
      $region59: #{ernie45_moe_block.5} parent=39 // pred_region
        %s1332 = smul.u32 16, %s32
      $region60: #{ernie45_moe_block.5} parent=39 // pred_fallthru
        _
    $region40: #{ernie45_moe_block.5} parent=5 // pred_fallthru
      _
    %p1333 = scmp.le.s32.totalorder 2, %s23
    // Predicated region
    $region61: #{ernie45_moe_block.5} parent=5 // pred_check
      %p1334 = pneg %p1333
    $region62: #{ernie45_moe_block.5} parent=5 // pred_check_branch
      %1336 = sbr.rel (%p1334) target = $region64
    $region63: #{ernie45_moe_block.5} parent=5 // pred_region
      %s1337 = ssub.s32 %s23, 2
      // Predicated region
      $region65: #{ernie45_moe_block.5} parent=63 // pred_check
        %p1338 = pneg %p206
      $region66: #{ernie45_moe_block.5} parent=63 // pred_check_branch
        %1340 = sbr.rel (%p1338) target = $region68
      $region67: #{ernie45_moe_block.5} parent=63 // pred_region
        %s1341 = smul.u32 16, %s34
        %p1342 = scmp.lt.s32.totalorder %s1341, 143
        %s1343 = scalar_select %p1342, %s1341, 143
        %s1344 = smul.addr %s1343, 8
        %s1345 = scalar_lea.vmem %s7, %s1344
      $region68: #{ernie45_moe_block.5} parent=63 // pred_fallthru
        _
    $region64: #{ernie45_moe_block.5} parent=5 // pred_fallthru
      _
  $region6: #{ernie45_moe_block.5} parent=0 // loop_footer
    %s27 = sadd.s32 1, %s23
  $region7: #{ernie45_moe_block.5} parent=0 // loop_footer_branch
    %22 = sbr.rel target = $region3
  $region8: #{ernie45_moe_block.5} parent=0 // loop_exit
    _

</llo_original>
